<compile_context>
chip_gen: v7x
topology: tpu7x:2x2x1
jax: 0.10.0
libtpu: 0.0.40
codegen_flags: <defaults>
</compile_context>

<pallas_src>
import jax
import jax.numpy as jnp
from jax.experimental import pallas as pl
from jax.experimental.pallas import tpu as pltpu

EPS = 1e-5   # PyTorch F.layer_norm default eps
LANE = 128


def _round_up(x, m):
    return (x + m - 1) // m * m


def _layer_norm(x, gamma=None, beta=None):
    """LayerNorm over last dim (biased variance), matching F.layer_norm."""
    mean = jnp.mean(x, axis=-1, keepdims=True)
    var = jnp.mean((x - mean) ** 2, axis=-1, keepdims=True)
    y = (x - mean) * jax.lax.rsqrt(var + EPS)
    if gamma is not None:
        y = y * gamma + beta
    return y


# ----------------------------------------------------------------------------
# Fused Pallas kernel: GraphNetNN value head + per-agent policy MLP
# ----------------------------------------------------------------------------
def prediction_kernel(x_ref,                     # [N, tb, D]   agent-major, bf16
                      w1_ref, b1_ref,            # [2D, Hg]=[W_nn1;W_gc1], [1, Hg]
                      w2_ref, b2_ref,            # [2Hg, Hg]=[W_nn2;W_gc2], [1, Hg]
                      wp1_ref, bp1_ref, gp1_ref, betap1_ref,   # policy fc1 + LN
                      wp2_ref,                   # [N*Hp, OUT]  block-diag fc2
                      wv_ref,                    # [Hg, OUT]    lane-shifted V
                      bout_ref,                  # [1, OUT]     combined out bias
                      out_ref):                  # [tb, OUT]    packed logits
    N = x_ref.shape[0]
    tb = x_ref.shape[1]
    bf16 = jnp.bfloat16
    f32 = jnp.float32

    # per-agent slabs (leading-dim indexing: free views)
    xs = [x_ref[n] for n in range(N)]            # each [tb, D] bf16
    x_sum = xs[0]
    for n in range(1, N):
        x_sum = x_sum + xs[n]
    x_flat = jnp.concatenate(xs, axis=0)                          # [N*tb, D]
    x_sum_rep = jnp.concatenate([x_sum] * N, axis=0)              # [N*tb, D]

    # ---- GNN layer 1: one folded matmul (K = 2D), adj = ones(N,N) ----------
    lhs1 = jnp.concatenate([x_flat, x_sum_rep], axis=-1)          # [N*tb, 2D]
    z1 = jnp.dot(lhs1, w1_ref[...], preferred_element_type=f32) + b1_ref[...]
    feat = _layer_norm(jnp.maximum(z1, 0.0)).astype(bf16)         # [N*tb, Hg]

    feats = [feat[n * tb:(n + 1) * tb, :] for n in range(N)]
    f_sum = feats[0]
    for n in range(1, N):
        f_sum = f_sum + feats[n]
    f_sum_rep = jnp.concatenate([f_sum] * N, axis=0)              # [N*tb, Hg]

    # ---- GNN layer 2: one folded matmul (K = 2Hg) ---------------------------
    lhs2 = jnp.concatenate([feat, f_sum_rep], axis=-1)            # [N*tb, 2Hg]
    z2 = jnp.dot(lhs2, w2_ref[...], preferred_element_type=f32) + b2_ref[...]
    out2 = _layer_norm(jnp.maximum(z2, 0.0))                      # f32 [N*tb, Hg]

    # ---- avg pool over agents + V linear (lane-shifted into packed output) -
    pooled = out2[0:tb, :]
    for n in range(1, N):
        pooled = pooled + out2[n * tb:(n + 1) * tb, :]
    pooled = (pooled * (1.0 / N)).astype(bf16)                    # [tb, Hg]
    acc = jnp.dot(pooled, wv_ref[...], preferred_element_type=f32)  # [tb, OUT]

    # ---- policy MLP (all agents folded): fc1 -> LN(affine) -> ReLU -> fc2 ---
    h = jnp.dot(x_flat, wp1_ref[...], preferred_element_type=f32) + bp1_ref[...]
    h = jnp.maximum(_layer_norm(h, gp1_ref[...], betap1_ref[...]), 0.0)
    h = h.astype(bf16)                                            # [N*tb, Hp]
    h_packed = jnp.concatenate(
        [h[n * tb:(n + 1) * tb, :] for n in range(N)], axis=-1)   # [tb, N*Hp]
    acc = acc + jnp.dot(h_packed, wp2_ref[...], preferred_element_type=f32)

    # single lane-dense store: policy lanes [0, N*A), value lanes [N*A, N*A+S)
    # TODO(synk): store in bf16 if downstream tolerates it (halves out writes).
    out_ref[...] = (acc + bout_ref[...]).astype(out_ref.dtype)


# ----------------------------------------------------------------------------
# Batch tiling: remainder-aware, >=2 grid steps for large B (dual-TC on v7x)
# ----------------------------------------------------------------------------
def _choose_tiling(B, tile_b_max):
    tile_b_max = max(16, tile_b_max - tile_b_max % 16)
    num_tiles = max(1, -(-B // tile_b_max))
    if num_tiles == 1 and B >= 64:
        num_tiles = 2        # let ("parallel",) shard across both v7x cores
    tile_b = _round_up(-(-B // num_tiles), 16)   # 16-sublane aligned (bf16 input)
    return tile_b, num_tiles


# ----------------------------------------------------------------------------
# Wrapper: weight packing, layout plumbing, pallas_call
# ----------------------------------------------------------------------------
def prediction_network_forward(hidden_state_total, params, num_agents, hidden_size,
                               tile_b_max=512):
    # tile_b_max=512 is safe under v5e's 16 MiB scoped-VMEM default; on v7x/v6e
    # it can be raised (with vmem_limit_bytes) to amortize per-step overhead.
    B = hidden_state_total.shape[0]
    N, D = num_agents, hidden_size
    f32, bf16 = jnp.float32, jnp.bfloat16

    Hg = params['w_gc1'].shape[1]
    Hp = params['w_p1'].shape[1]
    S = params['w_v'].shape[1]
    A = params['w_p2'].shape[1]
    P = N * A                                   # packed policy lanes
    OUT = _round_up(P + S, LANE)                # single lane-dense output slab

    tile_b, num_tiles = _choose_tiling(B, tile_b_max)
    B_pad = tile_b * num_tiles

    x = hidden_state_total.reshape(B, N, D).astype(bf16)
    x_nbd = jnp.transpose(x, (1, 0, 2))         # [N, B, D] agent-major
    if B_pad != B:
        x_nbd = jnp.pad(x_nbd, ((0, 0), (0, B_pad - B), (0, 0)))

    # ---- consolidated / packed parameter slabs (one-time host-side packing) -
    w1 = jnp.concatenate([params['w_nn1'], params['w_gc1']], axis=0).astype(bf16)
    b1 = (params['b_nn1'] + N * params['b_gc1']).astype(f32)    # adj=ones only
    w2 = jnp.concatenate([params['w_nn2'], params['w_gc2']], axis=0).astype(bf16)
    b2 = (params['b_nn2'] + N * params['b_gc2']).astype(f32)
    wp1 = params['w_p1'].astype(bf16)
    bp1 = params['b_p1'].astype(f32)
    gp1 = params['g_p1'].astype(f32)
    betap1 = params['beta_p1'].astype(f32)

    # block-diagonal policy fc2: agent n's logits land at lanes [n*A, (n+1)*A)
    wp2 = jnp.zeros((N * Hp, OUT), f32)
    bout = jnp.zeros((1, OUT), f32)
    for n in range(N):
        wp2 = wp2.at[n * Hp:(n + 1) * Hp, n * A:(n + 1) * A].set(params['w_p2'])
        bout = bout.at[:, n * A:(n + 1) * A].set(params['b_p2'])
    wp2 = wp2.astype(bf16)
    # value head lands at lanes [P, P+S)
    wv = jnp.zeros((Hg, OUT), f32).at[:, P:P + S].set(params['w_v']).astype(bf16)
    bout = bout.at[:, P:P + S].set(params['b_v'])

    grid = (num_tiles,)

    def run(weight_mode):
        def const_spec(shape):
            idx = lambda i: (0, 0)              # weights stay VMEM-resident
            if weight_mode is None:
                return pl.BlockSpec(shape, idx)
            return pl.BlockSpec(shape, idx, pipeline_mode=weight_mode)

        in_specs = [
            pl.BlockSpec((N, tile_b, D), lambda i: (0, i, 0)),
            const_spec(w1.shape), const_spec(b1.shape),
            const_spec(w2.shape), const_spec(b2.shape),
            const_spec(wp1.shape), const_spec(bp1.shape),
            const_spec(gp1.shape), const_spec(betap1.shape),
            const_spec(wp2.shape), const_spec(wv.shape), const_spec(bout.shape),
        ]
        out_specs = pl.BlockSpec((tile_b, OUT), lambda i: (i, 0))
        return pl.pallas_call(
            prediction_kernel,
            out_shape=jax.ShapeDtypeStruct((B_pad, OUT), f32),
            grid_spec=pltpu.PrefetchScalarGridSpec(
                num_scalar_prefetch=0,
                grid=grid,
                in_specs=in_specs,
                out_specs=out_specs),
            compiler_params=pltpu.CompilerParams(
                dimension_semantics=("parallel",)),
        )(x_nbd, w1, b1, w2, b2, wp1, bp1, gp1, betap1, wp2, wv, bout)

    try:
        out_full = run(pl.Buffered(1))   # single-buffer the constant weights
    except Exception:
        out_full = run(None)             # fall back to default double-buffering

    out = out_full[:B]                                  # [B, OUT]
    policy_logits = out[:, :P].reshape(B, N, A)
    value_logits = out[:, P:P + S]
    return policy_logits, value_logits


# ----------------------------------------------------------------------------
# Deterministic parameter init (shapes from PredictionNetwork.__init__)
# ----------------------------------------------------------------------------
def init_params(key, hidden_size, policy_hidden, action_space_size,
                gnn_hidden, value_support_size):
    ks = jax.random.split(key, 8)

    def lin(k, din, dout, scale=None):
        if scale is None:
            scale = 1.0 / (din ** 0.5)
        w = jax.random.uniform(k, (din, dout), jnp.float32, -scale, scale)
        b = jnp.zeros((1, dout), jnp.float32)
        return w, b

    p = {}
    # GraphNetNN value head
    p['w_gc1'], p['b_gc1'] = lin(ks[0], hidden_size, gnn_hidden)
    p['w_nn1'], p['b_nn1'] = lin(ks[1], hidden_size, gnn_hidden)
    p['w_gc2'], p['b_gc2'] = lin(ks[2], gnn_hidden, gnn_hidden)
    p['w_nn2'], p['b_nn2'] = lin(ks[3], gnn_hidden, gnn_hidden)
    # V layer: uniform(-0.003, 0.003), bias 0 (as in GraphNetNN.__init__)
    p['w_v'], p['b_v'] = lin(ks[4], gnn_hidden, value_support_size, scale=0.003)
    # policy MLP: Linear -> LayerNorm(affine) -> ReLU -> Linear (use_value_out=True)
    p['w_p1'], p['b_p1'] = lin(ks[5], hidden_size, policy_hidden)
    p['g_p1'] = jnp.ones((1, policy_hidden), jnp.float32)
    p['beta_p1'] = jnp.zeros((1, policy_hidden), jnp.float32)
    p['w_p2'], p['b_p2'] = lin(ks[6], policy_hidden, action_space_size, scale=0.001)
    return p


# ----------------------------------------------------------------------------
# Pure-JAX f32 reference (mirrors the PyTorch forward, for self-check)
# ----------------------------------------------------------------------------
def reference_forward(hidden_state_total, params, num_agents, hidden_size):
    B = hidden_state_total.shape[0]
    xr = hidden_state_total.reshape(B, num_agents, hidden_size)
    adj = jnp.ones((num_agents, num_agents), jnp.float32)

    lin1 = xr @ params['w_gc1'] + params['b_gc1'][0]
    gc1 = jnp.einsum('ij,bjh->bih', adj, lin1)
    nn1 = xr @ params['w_nn1'] + params['b_nn1'][0]
    feat = _layer_norm(jax.nn.relu(gc1 + nn1))

    lin2 = feat @ params['w_gc2'] + params['b_gc2'][0]
    gc2 = jnp.einsum('ij,bjh->bih', adj, lin2)
    nn2 = feat @ params['w_nn2'] + params['b_nn2'][0]
    out = _layer_norm(jax.nn.relu(gc2 + nn2))

    ret = out.mean(axis=1)
    value = ret @ params['w_v'] + params['b_v'][0]

    xf = xr.reshape(B * num_agents, hidden_size)
    h = xf @ params['w_p1'] + params['b_p1'][0]
    h = _layer_norm(h, params['g_p1'][0], params['beta_p1'][0])
    h = jax.nn.relu(h)
    pol = (h @ params['w_p2'] + params['b_p2'][0]).reshape(B, num_agents, -1)
    return pol, value


if __name__ == "__main__":
    # small config consistent with PredictionNetwork
    batch = 2
    num_agents = 4
    hidden_state_size = 32       # per-agent hidden state
    action_space_size = 10
    fc_policy_hidden = 32        # fc_policy_layers = [32]
    gnn_value_hidden_size = 64
    value_support_size = 21
    # TODO(synk): kernel is specialized to a single hidden layer in fc_policy
    # (fc_policy_layers=[32]) and value_head_type='gnn'/pool='avg'/
    # use_agent_id=False (the module defaults); deeper MLPs / the 'mlp' value
    # head would chain more matmul+LN stages in the same fused kernel.

    key = jax.random.PRNGKey(0)
    k_param, k_x = jax.random.split(key)
    params = init_params(k_param, hidden_state_size, fc_policy_hidden,
                         action_space_size, gnn_value_hidden_size,
                         value_support_size)

    hidden_state_total = jax.random.normal(
        k_x, (batch, num_agents * hidden_state_size), jnp.float32)

    policy_logits, value_logits = prediction_network_forward(
        hidden_state_total, params, num_agents, hidden_state_size)
    jax.block_until_ready((policy_logits, value_logits))

    # self-check against pure-JAX f32 reference (bf16 MXU operands -> looser tol)
    ref_pol, ref_val = reference_forward(
        hidden_state_total, params, num_agents, hidden_state_size)
    assert policy_logits.shape == (batch, num_agents, action_space_size)
    assert value_logits.shape == (batch, value_support_size)
    assert jnp.allclose(policy_logits, ref_pol, atol=2e-2, rtol=2e-2)
    assert jnp.allclose(value_logits, ref_val, atol=2e-2, rtol=2e-2)

    print("KERNEL_OK")
</pallas_src>

<mosaic_0001>
module attributes {stable_mosaic.version = 11 : i64} {
  func.func @prediction_kernel(%arg0: i32, %arg1: memref<4x16x32xbf16, #tpu.memory_space<vmem>>, %arg2: memref<64x64xbf16, #tpu.memory_space<vmem>>, %arg3: memref<1x64xf32, #tpu.memory_space<vmem>>, %arg4: memref<128x64xbf16, #tpu.memory_space<vmem>>, %arg5: memref<1x64xf32, #tpu.memory_space<vmem>>, %arg6: memref<32x32xbf16, #tpu.memory_space<vmem>>, %arg7: memref<1x32xf32, #tpu.memory_space<vmem>>, %arg8: memref<1x32xf32, #tpu.memory_space<vmem>>, %arg9: memref<1x32xf32, #tpu.memory_space<vmem>>, %arg10: memref<128x128xbf16, #tpu.memory_space<vmem>>, %arg11: memref<64x128xbf16, #tpu.memory_space<vmem>>, %arg12: memref<1x128xf32, #tpu.memory_space<vmem>>, %arg13: memref<16x128xf32, #tpu.memory_space<vmem>>) attributes {dimension_semantics = [#tpu.dimension_semantics<parallel>], iteration_bounds = array<i64: 1>, scalar_prefetch = 0 : i64, scratch_operands = 0 : i64, tpu.core_type = #tpu.core_type<tc>, window_params = [{transform_indices = @transform_0, window_bounds = array<i64: 4, 16, 32>}, {pipeline_mode = #tpu.pipeline_mode<synchronous>, transform_indices = @transform_1, window_bounds = array<i64: 64, 64>}, {pipeline_mode = #tpu.pipeline_mode<synchronous>, transform_indices = @transform_2, window_bounds = array<i64: 1, 64>}, {pipeline_mode = #tpu.pipeline_mode<synchronous>, transform_indices = @transform_3, window_bounds = array<i64: 128, 64>}, {pipeline_mode = #tpu.pipeline_mode<synchronous>, transform_indices = @transform_4, window_bounds = array<i64: 1, 64>}, {pipeline_mode = #tpu.pipeline_mode<synchronous>, transform_indices = @transform_5, window_bounds = array<i64: 32, 32>}, {pipeline_mode = #tpu.pipeline_mode<synchronous>, transform_indices = @transform_6, window_bounds = array<i64: 1, 32>}, {pipeline_mode = #tpu.pipeline_mode<synchronous>, transform_indices = @transform_7, window_bounds = array<i64: 1, 32>}, {pipeline_mode = #tpu.pipeline_mode<synchronous>, transform_indices = @transform_8, window_bounds = array<i64: 1, 32>}, {pipeline_mode = #tpu.pipeline_mode<synchronous>, transform_indices = @transform_9, window_bounds = array<i64: 128, 128>}, {pipeline_mode = #tpu.pipeline_mode<synchronous>, transform_indices = @transform_10, window_bounds = array<i64: 64, 128>}, {pipeline_mode = #tpu.pipeline_mode<synchronous>, transform_indices = @transform_11, window_bounds = array<i64: 1, 128>}, {transform_indices = @transform_12, window_bounds = array<i64: 16, 128>}]} {
    %c0 = arith.constant 0 : index
    %c0_0 = arith.constant 0 : index
    %c0_1 = arith.constant 0 : index
    %0 = vector.load %arg1[%c0, %c0_0, %c0_1] : memref<4x16x32xbf16, #tpu.memory_space<vmem>>, vector<1x16x32xbf16>
    %1 = vector.shape_cast %0 : vector<1x16x32xbf16> to vector<16x32xbf16>
    %c1 = arith.constant 1 : index
    %c0_2 = arith.constant 0 : index
    %c0_3 = arith.constant 0 : index
    %2 = vector.load %arg1[%c1, %c0_2, %c0_3] : memref<4x16x32xbf16, #tpu.memory_space<vmem>>, vector<1x16x32xbf16>
    %3 = vector.shape_cast %2 : vector<1x16x32xbf16> to vector<16x32xbf16>
    %c2 = arith.constant 2 : index
    %c0_4 = arith.constant 0 : index
    %c0_5 = arith.constant 0 : index
    %4 = vector.load %arg1[%c2, %c0_4, %c0_5] : memref<4x16x32xbf16, #tpu.memory_space<vmem>>, vector<1x16x32xbf16>
    %5 = vector.shape_cast %4 : vector<1x16x32xbf16> to vector<16x32xbf16>
    %c3 = arith.constant 3 : index
    %c0_6 = arith.constant 0 : index
    %c0_7 = arith.constant 0 : index
    %6 = vector.load %arg1[%c3, %c0_6, %c0_7] : memref<4x16x32xbf16, #tpu.memory_space<vmem>>, vector<1x16x32xbf16>
    %7 = vector.shape_cast %6 : vector<1x16x32xbf16> to vector<16x32xbf16>
    %8 = arith.addf %1, %3 : vector<16x32xbf16>
    %9 = arith.addf %8, %5 : vector<16x32xbf16>
    %10 = arith.addf %9, %7 : vector<16x32xbf16>
    %11 = tpu.concatenate %1, %3, %5, %7 in 0 : vector<16x32xbf16>, vector<16x32xbf16>, vector<16x32xbf16>, vector<16x32xbf16> -> vector<64x32xbf16>
    %12 = tpu.concatenate %10, %10, %10, %10 in 0 : vector<16x32xbf16>, vector<16x32xbf16>, vector<16x32xbf16>, vector<16x32xbf16> -> vector<64x32xbf16>
    %13 = tpu.concatenate %11, %12 in 1 : vector<64x32xbf16>, vector<64x32xbf16> -> vector<64x64xbf16>
    %c0_8 = arith.constant 0 : index
    %c0_9 = arith.constant 0 : index
    %14 = vector.load %arg2[%c0_8, %c0_9] : memref<64x64xbf16, #tpu.memory_space<vmem>>, vector<64x64xbf16>
    %cst = arith.constant dense<0.000000e+00> : vector<64x64xf32>
    %15 = tpu.matmul %13, %14, %cst {dimension_numbers = #tpu.dot_dimension_numbers<[1], [0], [0], [1], [0, 0, 1, 1], [], []>} : vector<64x64xbf16>, vector<64x64xbf16>, vector<64x64xf32> -> vector<64x64xf32>
    %c0_10 = arith.constant 0 : index
    %c0_11 = arith.constant 0 : index
    %16 = vector.load %arg3[%c0_10, %c0_11] : memref<1x64xf32, #tpu.memory_space<vmem>>, vector<1x64xf32>
    %17 = vector.broadcast %16 : vector<1x64xf32> to vector<64x64xf32>
    %18 = arith.addf %15, %17 : vector<64x64xf32>
    %cst_12 = arith.constant 0.000000e+00 : f32
    %19 = vector.broadcast %cst_12 : f32 to vector<64x64xf32>
    %20 = arith.maximumf %18, %19 : vector<64x64xf32>
    %cst_13 = arith.constant dense<0.000000e+00> : vector<64xf32>
    %21 = vector.multi_reduction <add>, %20, %cst_13 [1] : vector<64x64xf32> to vector<64xf32>
    %22 = vector.shape_cast %21 : vector<64xf32> to vector<64x1xf32>
    %cst_14 = arith.constant 6.400000e+01 : f32
    %23 = vector.broadcast %cst_14 : f32 to vector<64x1xf32>
    %24 = arith.divf %22, %23 : vector<64x1xf32>
    %25 = vector.broadcast %24 : vector<64x1xf32> to vector<64x64xf32>
    %26 = arith.subf %20, %25 : vector<64x64xf32>
    %27 = arith.mulf %26, %26 : vector<64x64xf32>
    %cst_15 = arith.constant dense<0.000000e+00> : vector<64xf32>
    %28 = vector.multi_reduction <add>, %27, %cst_15 [1] : vector<64x64xf32> to vector<64xf32>
    %29 = vector.shape_cast %28 : vector<64xf32> to vector<64x1xf32>
    %cst_16 = arith.constant 6.400000e+01 : f32
    %30 = vector.broadcast %cst_16 : f32 to vector<64x1xf32>
    %31 = arith.divf %29, %30 : vector<64x1xf32>
    %32 = vector.broadcast %24 : vector<64x1xf32> to vector<64x64xf32>
    %33 = arith.subf %20, %32 : vector<64x64xf32>
    %cst_17 = arith.constant 9.99999974E-6 : f32
    %34 = vector.broadcast %cst_17 : f32 to vector<64x1xf32>
    %35 = arith.addf %31, %34 : vector<64x1xf32>
    %36 = math.rsqrt %35 : vector<64x1xf32>
    %37 = vector.broadcast %36 : vector<64x1xf32> to vector<64x64xf32>
    %38 = arith.mulf %33, %37 : vector<64x64xf32>
    %39 = arith.truncf %38 : vector<64x64xf32> to vector<64x64xbf16>
    %40 = vector.extract_strided_slice %39 {offsets = [0, 0], sizes = [16, 64], strides = [1, 1]} : vector<64x64xbf16> to vector<16x64xbf16>
    %41 = vector.extract_strided_slice %39 {offsets = [16, 0], sizes = [16, 64], strides = [1, 1]} : vector<64x64xbf16> to vector<16x64xbf16>
    %42 = vector.extract_strided_slice %39 {offsets = [32, 0], sizes = [16, 64], strides = [1, 1]} : vector<64x64xbf16> to vector<16x64xbf16>
    %43 = vector.extract_strided_slice %39 {offsets = [48, 0], sizes = [16, 64], strides = [1, 1]} : vector<64x64xbf16> to vector<16x64xbf16>
    %44 = arith.addf %40, %41 : vector<16x64xbf16>
    %45 = arith.addf %44, %42 : vector<16x64xbf16>
    %46 = arith.addf %45, %43 : vector<16x64xbf16>
    %47 = tpu.concatenate %46, %46, %46, %46 in 0 : vector<16x64xbf16>, vector<16x64xbf16>, vector<16x64xbf16>, vector<16x64xbf16> -> vector<64x64xbf16>
    %48 = tpu.concatenate %39, %47 in 1 : vector<64x64xbf16>, vector<64x64xbf16> -> vector<64x128xbf16>
    %c0_18 = arith.constant 0 : index
    %c0_19 = arith.constant 0 : index
    %49 = vector.load %arg4[%c0_18, %c0_19] : memref<128x64xbf16, #tpu.memory_space<vmem>>, vector<128x64xbf16>
    %cst_20 = arith.constant dense<0.000000e+00> : vector<64x64xf32>
    %50 = tpu.matmul %48, %49, %cst_20 {dimension_numbers = #tpu.dot_dimension_numbers<[1], [0], [0], [1], [0, 0, 1, 1], [], []>} : vector<64x128xbf16>, vector<128x64xbf16>, vector<64x64xf32> -> vector<64x64xf32>
    %c0_21 = arith.constant 0 : index
    %c0_22 = arith.constant 0 : index
    %51 = vector.load %arg5[%c0_21, %c0_22] : memref<1x64xf32, #tpu.memory_space<vmem>>, vector<1x64xf32>
    %52 = vector.broadcast %51 : vector<1x64xf32> to vector<64x64xf32>
    %53 = arith.addf %50, %52 : vector<64x64xf32>
    %cst_23 = arith.constant 0.000000e+00 : f32
    %54 = vector.broadcast %cst_23 : f32 to vector<64x64xf32>
    %55 = arith.maximumf %53, %54 : vector<64x64xf32>
    %cst_24 = arith.constant dense<0.000000e+00> : vector<64xf32>
    %56 = vector.multi_reduction <add>, %55, %cst_24 [1] : vector<64x64xf32> to vector<64xf32>
    %57 = vector.shape_cast %56 : vector<64xf32> to vector<64x1xf32>
    %cst_25 = arith.constant 6.400000e+01 : f32
    %58 = vector.broadcast %cst_25 : f32 to vector<64x1xf32>
    %59 = arith.divf %57, %58 : vector<64x1xf32>
    %60 = vector.broadcast %59 : vector<64x1xf32> to vector<64x64xf32>
    %61 = arith.subf %55, %60 : vector<64x64xf32>
    %62 = arith.mulf %61, %61 : vector<64x64xf32>
    %cst_26 = arith.constant dense<0.000000e+00> : vector<64xf32>
    %63 = vector.multi_reduction <add>, %62, %cst_26 [1] : vector<64x64xf32> to vector<64xf32>
    %64 = vector.shape_cast %63 : vector<64xf32> to vector<64x1xf32>
    %cst_27 = arith.constant 6.400000e+01 : f32
    %65 = vector.broadcast %cst_27 : f32 to vector<64x1xf32>
    %66 = arith.divf %64, %65 : vector<64x1xf32>
    %67 = vector.broadcast %59 : vector<64x1xf32> to vector<64x64xf32>
    %68 = arith.subf %55, %67 : vector<64x64xf32>
    %cst_28 = arith.constant 9.99999974E-6 : f32
    %69 = vector.broadcast %cst_28 : f32 to vector<64x1xf32>
    %70 = arith.addf %66, %69 : vector<64x1xf32>
    %71 = math.rsqrt %70 : vector<64x1xf32>
    %72 = vector.broadcast %71 : vector<64x1xf32> to vector<64x64xf32>
    %73 = arith.mulf %68, %72 : vector<64x64xf32>
    %74 = vector.extract_strided_slice %73 {offsets = [0, 0], sizes = [16, 64], strides = [1, 1]} : vector<64x64xf32> to vector<16x64xf32>
    %75 = vector.extract_strided_slice %73 {offsets = [16, 0], sizes = [16, 64], strides = [1, 1]} : vector<64x64xf32> to vector<16x64xf32>
    %76 = arith.addf %74, %75 : vector<16x64xf32>
    %77 = vector.extract_strided_slice %73 {offsets = [32, 0], sizes = [16, 64], strides = [1, 1]} : vector<64x64xf32> to vector<16x64xf32>
    %78 = arith.addf %76, %77 : vector<16x64xf32>
    %79 = vector.extract_strided_slice %73 {offsets = [48, 0], sizes = [16, 64], strides = [1, 1]} : vector<64x64xf32> to vector<16x64xf32>
    %80 = arith.addf %78, %79 : vector<16x64xf32>
    %cst_29 = arith.constant 2.500000e-01 : f32
    %81 = vector.broadcast %cst_29 : f32 to vector<16x64xf32>
    %82 = arith.mulf %80, %81 : vector<16x64xf32>
    %83 = arith.truncf %82 : vector<16x64xf32> to vector<16x64xbf16>
    %c0_30 = arith.constant 0 : index
    %c0_31 = arith.constant 0 : index
    %84 = vector.load %arg11[%c0_30, %c0_31] : memref<64x128xbf16, #tpu.memory_space<vmem>>, vector<64x128xbf16>
    %cst_32 = arith.constant dense<0.000000e+00> : vector<16x128xf32>
    %85 = tpu.matmul %83, %84, %cst_32 {dimension_numbers = #tpu.dot_dimension_numbers<[1], [0], [0], [1], [0, 0, 1, 1], [], []>} : vector<16x64xbf16>, vector<64x128xbf16>, vector<16x128xf32> -> vector<16x128xf32>
    %c0_33 = arith.constant 0 : index
    %c0_34 = arith.constant 0 : index
    %86 = vector.load %arg6[%c0_33, %c0_34] : memref<32x32xbf16, #tpu.memory_space<vmem>>, vector<32x32xbf16>
    %cst_35 = arith.constant dense<0.000000e+00> : vector<64x32xf32>
    %87 = tpu.matmul %11, %86, %cst_35 {dimension_numbers = #tpu.dot_dimension_numbers<[1], [0], [0], [1], [0, 0, 1, 1], [], []>} : vector<64x32xbf16>, vector<32x32xbf16>, vector<64x32xf32> -> vector<64x32xf32>
    %c0_36 = arith.constant 0 : index
    %c0_37 = arith.constant 0 : index
    %88 = vector.load %arg7[%c0_36, %c0_37] : memref<1x32xf32, #tpu.memory_space<vmem>>, vector<1x32xf32>
    %89 = vector.broadcast %88 : vector<1x32xf32> to vector<64x32xf32>
    %90 = arith.addf %87, %89 : vector<64x32xf32>
    %c0_38 = arith.constant 0 : index
    %c0_39 = arith.constant 0 : index
    %91 = vector.load %arg8[%c0_38, %c0_39] : memref<1x32xf32, #tpu.memory_space<vmem>>, vector<1x32xf32>
    %c0_40 = arith.constant 0 : index
    %c0_41 = arith.constant 0 : index
    %92 = vector.load %arg9[%c0_40, %c0_41] : memref<1x32xf32, #tpu.memory_space<vmem>>, vector<1x32xf32>
    %cst_42 = arith.constant dense<0.000000e+00> : vector<64xf32>
    %93 = vector.multi_reduction <add>, %90, %cst_42 [1] : vector<64x32xf32> to vector<64xf32>
    %94 = vector.shape_cast %93 : vector<64xf32> to vector<64x1xf32>
    %cst_43 = arith.constant 3.200000e+01 : f32
    %95 = vector.broadcast %cst_43 : f32 to vector<64x1xf32>
    %96 = arith.divf %94, %95 : vector<64x1xf32>
    %97 = vector.broadcast %96 : vector<64x1xf32> to vector<64x32xf32>
    %98 = arith.subf %90, %97 : vector<64x32xf32>
    %99 = arith.mulf %98, %98 : vector<64x32xf32>
    %cst_44 = arith.constant dense<0.000000e+00> : vector<64xf32>
    %100 = vector.multi_reduction <add>, %99, %cst_44 [1] : vector<64x32xf32> to vector<64xf32>
    %101 = vector.shape_cast %100 : vector<64xf32> to vector<64x1xf32>
    %cst_45 = arith.constant 3.200000e+01 : f32
    %102 = vector.broadcast %cst_45 : f32 to vector<64x1xf32>
    %103 = arith.divf %101, %102 : vector<64x1xf32>
    %104 = vector.broadcast %96 : vector<64x1xf32> to vector<64x32xf32>
    %105 = arith.subf %90, %104 : vector<64x32xf32>
    %cst_46 = arith.constant 9.99999974E-6 : f32
    %106 = vector.broadcast %cst_46 : f32 to vector<64x1xf32>
    %107 = arith.addf %103, %106 : vector<64x1xf32>
    %108 = math.rsqrt %107 : vector<64x1xf32>
    %109 = vector.broadcast %108 : vector<64x1xf32> to vector<64x32xf32>
    %110 = arith.mulf %105, %109 : vector<64x32xf32>
    %111 = vector.broadcast %91 : vector<1x32xf32> to vector<64x32xf32>
    %112 = arith.mulf %110, %111 : vector<64x32xf32>
    %113 = vector.broadcast %92 : vector<1x32xf32> to vector<64x32xf32>
    %114 = arith.addf %112, %113 : vector<64x32xf32>
    %cst_47 = arith.constant 0.000000e+00 : f32
    %115 = vector.broadcast %cst_47 : f32 to vector<64x32xf32>
    %116 = arith.maximumf %114, %115 : vector<64x32xf32>
    %117 = arith.truncf %116 : vector<64x32xf32> to vector<64x32xbf16>
    %118 = vector.extract_strided_slice %117 {offsets = [0, 0], sizes = [16, 32], strides = [1, 1]} : vector<64x32xbf16> to vector<16x32xbf16>
    %119 = vector.extract_strided_slice %117 {offsets = [16, 0], sizes = [16, 32], strides = [1, 1]} : vector<64x32xbf16> to vector<16x32xbf16>
    %120 = vector.extract_strided_slice %117 {offsets = [32, 0], sizes = [16, 32], strides = [1, 1]} : vector<64x32xbf16> to vector<16x32xbf16>
    %121 = vector.extract_strided_slice %117 {offsets = [48, 0], sizes = [16, 32], strides = [1, 1]} : vector<64x32xbf16> to vector<16x32xbf16>
    %122 = tpu.concatenate %118, %119, %120, %121 in 1 : vector<16x32xbf16>, vector<16x32xbf16>, vector<16x32xbf16>, vector<16x32xbf16> -> vector<16x128xbf16>
    %c0_48 = arith.constant 0 : index
    %c0_49 = arith.constant 0 : index
    %123 = vector.load %arg10[%c0_48, %c0_49] : memref<128x128xbf16, #tpu.memory_space<vmem>>, vector<128x128xbf16>
    %cst_50 = arith.constant dense<0.000000e+00> : vector<16x128xf32>
    %124 = tpu.matmul %122, %123, %cst_50 {dimension_numbers = #tpu.dot_dimension_numbers<[1], [0], [0], [1], [0, 0, 1, 1], [], []>} : vector<16x128xbf16>, vector<128x128xbf16>, vector<16x128xf32> -> vector<16x128xf32>
    %125 = arith.addf %85, %124 : vector<16x128xf32>
    %c0_51 = arith.constant 0 : index
    %c0_52 = arith.constant 0 : index
    %126 = vector.load %arg12[%c0_51, %c0_52] : memref<1x128xf32, #tpu.memory_space<vmem>>, vector<1x128xf32>
    %127 = vector.broadcast %126 : vector<1x128xf32> to vector<16x128xf32>
    %128 = arith.addf %125, %127 : vector<16x128xf32>
    %c0_53 = arith.constant 0 : index
    %c0_54 = arith.constant 0 : index
    %129 = vector.load %arg13[%c0_53, %c0_54] : memref<16x128xf32, #tpu.memory_space<vmem>>, vector<16x128xf32>
    tpu.vector_store %arg13[%c0_53, %c0_54], %128 {strides = array<i32>} : memref<16x128xf32, #tpu.memory_space<vmem>>, vector<16x128xf32>,
    return
  }
  func.func @transform_0(%arg0: i32) -> (i32, i32, i32) {
    %c0_i32 = arith.constant 0 : i32
    %c0_i32_0 = arith.constant 0 : i32
    %c0_i32_1 = arith.constant 0 : i32
    return %c0_i32, %arg0, %c0_i32_0 : i32, i32, i32
  }
  func.func @transform_1(%arg0: i32) -> (i32, i32) {
    %c0_i32 = arith.constant 0 : i32
    %c0_i32_0 = arith.constant 0 : i32
    %c0_i32_1 = arith.constant 0 : i32
    return %c0_i32, %c0_i32_0 : i32, i32
  }
  func.func @transform_2(%arg0: i32) -> (i32, i32) {
    %c0_i32 = arith.constant 0 : i32
    %c0_i32_0 = arith.constant 0 : i32
    %c0_i32_1 = arith.constant 0 : i32
    return %c0_i32, %c0_i32_0 : i32, i32
  }
  func.func @transform_3(%arg0: i32) -> (i32, i32) {
    %c0_i32 = arith.constant 0 : i32
    %c0_i32_0 = arith.constant 0 : i32
    %c0_i32_1 = arith.constant 0 : i32
    return %c0_i32, %c0_i32_0 : i32, i32
  }
  func.func @transform_4(%arg0: i32) -> (i32, i32) {
    %c0_i32 = arith.constant 0 : i32
    %c0_i32_0 = arith.constant 0 : i32
    %c0_i32_1 = arith.constant 0 : i32
    return %c0_i32, %c0_i32_0 : i32, i32
  }
  func.func @transform_5(%arg0: i32) -> (i32, i32) {
    %c0_i32 = arith.constant 0 : i32
    %c0_i32_0 = arith.constant 0 : i32
    %c0_i32_1 = arith.constant 0 : i32
    return %c0_i32, %c0_i32_0 : i32, i32
  }
  func.func @transform_6(%arg0: i32) -> (i32, i32) {
    %c0_i32 = arith.constant 0 : i32
    %c0_i32_0 = arith.constant 0 : i32
    %c0_i32_1 = arith.constant 0 : i32
    return %c0_i32, %c0_i32_0 : i32, i32
  }
  func.func @transform_7(%arg0: i32) -> (i32, i32) {
    %c0_i32 = arith.constant 0 : i32
    %c0_i32_0 = arith.constant 0 : i32
    %c0_i32_1 = arith.constant 0 : i32
    return %c0_i32, %c0_i32_0 : i32, i32
  }
  func.func @transform_8(%arg0: i32) -> (i32, i32) {
    %c0_i32 = arith.constant 0 : i32
    %c0_i32_0 = arith.constant 0 : i32
    %c0_i32_1 = arith.constant 0 : i32
    return %c0_i32, %c0_i32_0 : i32, i32
  }
  func.func @transform_9(%arg0: i32) -> (i32, i32) {
    %c0_i32 = arith.constant 0 : i32
    %c0_i32_0 = arith.constant 0 : i32
    %c0_i32_1 = arith.constant 0 : i32
    return %c0_i32, %c0_i32_0 : i32, i32
  }
  func.func @transform_10(%arg0: i32) -> (i32, i32) {
    %c0_i32 = arith.constant 0 : i32
    %c0_i32_0 = arith.constant 0 : i32
    %c0_i32_1 = arith.constant 0 : i32
    return %c0_i32, %c0_i32_0 : i32, i32
  }
  func.func @transform_11(%arg0: i32) -> (i32, i32) {
    %c0_i32 = arith.constant 0 : i32
    %c0_i32_0 = arith.constant 0 : i32
    %c0_i32_1 = arith.constant 0 : i32
    return %c0_i32, %c0_i32_0 : i32, i32
  }
  func.func @transform_12(%arg0: i32) -> (i32, i32) {
    %c0_i32 = arith.constant 0 : i32
    %c0_i32_0 = arith.constant 0 : i32
    return %arg0, %c0_i32 : i32, i32
  }
}

module attributes {stable_mosaic.version = 11 : i64} {
  func.func @prediction_kernel(%arg0: i32, %arg1: memref<4x16x32xbf16, #tpu.memory_space<vmem>>, %arg2: memref<64x64xbf16, #tpu.memory_space<vmem>>, %arg3: memref<1x64xf32, #tpu.memory_space<vmem>>, %arg4: memref<128x64xbf16, #tpu.memory_space<vmem>>, %arg5: memref<1x64xf32, #tpu.memory_space<vmem>>, %arg6: memref<32x32xbf16, #tpu.memory_space<vmem>>, %arg7: memref<1x32xf32, #tpu.memory_space<vmem>>, %arg8: memref<1x32xf32, #tpu.memory_space<vmem>>, %arg9: memref<1x32xf32, #tpu.memory_space<vmem>>, %arg10: memref<128x128xbf16, #tpu.memory_space<vmem>>, %arg11: memref<64x128xbf16, #tpu.memory_space<vmem>>, %arg12: memref<1x128xf32, #tpu.memory_space<vmem>>, %arg13: memref<16x128xf32, #tpu.memory_space<vmem>>) attributes {dimension_semantics = [#tpu.dimension_semantics<parallel>], iteration_bounds = array<i64: 1>, scalar_prefetch = 0 : i64, scratch_operands = 0 : i64, tpu.core_type = #tpu.core_type<tc>, window_params = [{transform_indices = @transform_0, window_bounds = array<i64: 4, 16, 32>}, {pipeline_mode = #tpu.pipeline_mode<synchronous>, transform_indices = @transform_1, window_bounds = array<i64: 64, 64>}, {pipeline_mode = #tpu.pipeline_mode<synchronous>, transform_indices = @transform_2, window_bounds = array<i64: 1, 64>}, {pipeline_mode = #tpu.pipeline_mode<synchronous>, transform_indices = @transform_3, window_bounds = array<i64: 128, 64>}, {pipeline_mode = #tpu.pipeline_mode<synchronous>, transform_indices = @transform_4, window_bounds = array<i64: 1, 64>}, {pipeline_mode = #tpu.pipeline_mode<synchronous>, transform_indices = @transform_5, window_bounds = array<i64: 32, 32>}, {pipeline_mode = #tpu.pipeline_mode<synchronous>, transform_indices = @transform_6, window_bounds = array<i64: 1, 32>}, {pipeline_mode = #tpu.pipeline_mode<synchronous>, transform_indices = @transform_7, window_bounds = array<i64: 1, 32>}, {pipeline_mode = #tpu.pipeline_mode<synchronous>, transform_indices = @transform_8, window_bounds = array<i64: 1, 32>}, {pipeline_mode = #tpu.pipeline_mode<synchronous>, transform_indices = @transform_9, window_bounds = array<i64: 128, 128>}, {pipeline_mode = #tpu.pipeline_mode<synchronous>, transform_indices = @transform_10, window_bounds = array<i64: 64, 128>}, {pipeline_mode = #tpu.pipeline_mode<synchronous>, transform_indices = @transform_11, window_bounds = array<i64: 1, 128>}, {transform_indices = @transform_12, window_bounds = array<i64: 16, 128>}]} {
    %c0 = arith.constant 0 : index
    %c0_0 = arith.constant 0 : index
    %c0_1 = arith.constant 0 : index
    %0 = vector.load %arg1[%c0, %c0_0, %c0_1] : memref<4x16x32xbf16, #tpu.memory_space<vmem>>, vector<1x16x32xbf16>
    %1 = vector.shape_cast %0 : vector<1x16x32xbf16> to vector<16x32xbf16>
    %c1 = arith.constant 1 : index
    %c0_2 = arith.constant 0 : index
    %c0_3 = arith.constant 0 : index
    %2 = vector.load %arg1[%c1, %c0_2, %c0_3] : memref<4x16x32xbf16, #tpu.memory_space<vmem>>, vector<1x16x32xbf16>
    %3 = vector.shape_cast %2 : vector<1x16x32xbf16> to vector<16x32xbf16>
    %c2 = arith.constant 2 : index
    %c0_4 = arith.constant 0 : index
    %c0_5 = arith.constant 0 : index
    %4 = vector.load %arg1[%c2, %c0_4, %c0_5] : memref<4x16x32xbf16, #tpu.memory_space<vmem>>, vector<1x16x32xbf16>
    %5 = vector.shape_cast %4 : vector<1x16x32xbf16> to vector<16x32xbf16>
    %c3 = arith.constant 3 : index
    %c0_6 = arith.constant 0 : index
    %c0_7 = arith.constant 0 : index
    %6 = vector.load %arg1[%c3, %c0_6, %c0_7] : memref<4x16x32xbf16, #tpu.memory_space<vmem>>, vector<1x16x32xbf16>
    %7 = vector.shape_cast %6 : vector<1x16x32xbf16> to vector<16x32xbf16>
    %8 = arith.addf %1, %3 : vector<16x32xbf16>
    %9 = arith.addf %8, %5 : vector<16x32xbf16>
    %10 = arith.addf %9, %7 : vector<16x32xbf16>
    %11 = tpu.concatenate %1, %3, %5, %7 in 0 : vector<16x32xbf16>, vector<16x32xbf16>, vector<16x32xbf16>, vector<16x32xbf16> -> vector<64x32xbf16>
    %12 = tpu.concatenate %10, %10, %10, %10 in 0 : vector<16x32xbf16>, vector<16x32xbf16>, vector<16x32xbf16>, vector<16x32xbf16> -> vector<64x32xbf16>
    %13 = tpu.concatenate %11, %12 in 1 : vector<64x32xbf16>, vector<64x32xbf16> -> vector<64x64xbf16>
    %c0_8 = arith.constant 0 : index
    %c0_9 = arith.constant 0 : index
    %14 = vector.load %arg2[%c0_8, %c0_9] : memref<64x64xbf16, #tpu.memory_space<vmem>>, vector<64x64xbf16>
    %cst = arith.constant dense<0.000000e+00> : vector<64x64xf32>
    %15 = tpu.matmul %13, %14, %cst {dimension_numbers = #tpu.dot_dimension_numbers<[1], [0], [0], [1], [0, 0, 1, 1], [], []>} : vector<64x64xbf16>, vector<64x64xbf16>, vector<64x64xf32> -> vector<64x64xf32>
    %c0_10 = arith.constant 0 : index
    %c0_11 = arith.constant 0 : index
    %16 = vector.load %arg3[%c0_10, %c0_11] : memref<1x64xf32, #tpu.memory_space<vmem>>, vector<1x64xf32>
    %17 = vector.broadcast %16 : vector<1x64xf32> to vector<64x64xf32>
    %18 = arith.addf %15, %17 : vector<64x64xf32>
    %cst_12 = arith.constant 0.000000e+00 : f32
    %19 = vector.broadcast %cst_12 : f32 to vector<64x64xf32>
    %20 = arith.maximumf %18, %19 : vector<64x64xf32>
    %cst_13 = arith.constant dense<0.000000e+00> : vector<64xf32>
    %21 = vector.multi_reduction <add>, %20, %cst_13 [1] : vector<64x64xf32> to vector<64xf32>
    %22 = vector.shape_cast %21 : vector<64xf32> to vector<64x1xf32>
    %cst_14 = arith.constant 6.400000e+01 : f32
    %23 = vector.broadcast %cst_14 : f32 to vector<64x1xf32>
    %24 = arith.divf %22, %23 : vector<64x1xf32>
    %25 = vector.broadcast %24 : vector<64x1xf32> to vector<64x64xf32>
    %26 = arith.subf %20, %25 : vector<64x64xf32>
    %27 = arith.mulf %26, %26 : vector<64x64xf32>
    %cst_15 = arith.constant dense<0.000000e+00> : vector<64xf32>
    %28 = vector.multi_reduction <add>, %27, %cst_15 [1] : vector<64x64xf32> to vector<64xf32>
    %29 = vector.shape_cast %28 : vector<64xf32> to vector<64x1xf32>
    %cst_16 = arith.constant 6.400000e+01 : f32
    %30 = vector.broadcast %cst_16 : f32 to vector<64x1xf32>
    %31 = arith.divf %29, %30 : vector<64x1xf32>
    %32 = vector.broadcast %24 : vector<64x1xf32> to vector<64x64xf32>
    %33 = arith.subf %20, %32 : vector<64x64xf32>
    %cst_17 = arith.constant 9.99999974E-6 : f32
    %34 = vector.broadcast %cst_17 : f32 to vector<64x1xf32>
    %35 = arith.addf %31, %34 : vector<64x1xf32>
    %36 = math.rsqrt %35 : vector<64x1xf32>
    %37 = vector.broadcast %36 : vector<64x1xf32> to vector<64x64xf32>
    %38 = arith.mulf %33, %37 : vector<64x64xf32>
    %39 = arith.truncf %38 : vector<64x64xf32> to vector<64x64xbf16>
    %40 = vector.extract_strided_slice %39 {offsets = [0, 0], sizes = [16, 64], strides = [1, 1]} : vector<64x64xbf16> to vector<16x64xbf16>
    %41 = vector.extract_strided_slice %39 {offsets = [16, 0], sizes = [16, 64], strides = [1, 1]} : vector<64x64xbf16> to vector<16x64xbf16>
    %42 = vector.extract_strided_slice %39 {offsets = [32, 0], sizes = [16, 64], strides = [1, 1]} : vector<64x64xbf16> to vector<16x64xbf16>
    %43 = vector.extract_strided_slice %39 {offsets = [48, 0], sizes = [16, 64], strides = [1, 1]} : vector<64x64xbf16> to vector<16x64xbf16>
    %44 = arith.addf %40, %41 : vector<16x64xbf16>
    %45 = arith.addf %44, %42 : vector<16x64xbf16>
    %46 = arith.addf %45, %43 : vector<16x64xbf16>
    %47 = tpu.concatenate %46, %46, %46, %46 in 0 : vector<16x64xbf16>, vector<16x64xbf16>, vector<16x64xbf16>, vector<16x64xbf16> -> vector<64x64xbf16>
    %48 = tpu.concatenate %39, %47 in 1 : vector<64x64xbf16>, vector<64x64xbf16> -> vector<64x128xbf16>
    %c0_18 = arith.constant 0 : index
    %c0_19 = arith.constant 0 : index
    %49 = vector.load %arg4[%c0_18, %c0_19] : memref<128x64xbf16, #tpu.memory_space<vmem>>, vector<128x64xbf16>
    %cst_20 = arith.constant dense<0.000000e+00> : vector<64x64xf32>
    %50 = tpu.matmul %48, %49, %cst_20 {dimension_numbers = #tpu.dot_dimension_numbers<[1], [0], [0], [1], [0, 0, 1, 1], [], []>} : vector<64x128xbf16>, vector<128x64xbf16>, vector<64x64xf32> -> vector<64x64xf32>
    %c0_21 = arith.constant 0 : index
    %c0_22 = arith.constant 0 : index
    %51 = vector.load %arg5[%c0_21, %c0_22] : memref<1x64xf32, #tpu.memory_space<vmem>>, vector<1x64xf32>
    %52 = vector.broadcast %51 : vector<1x64xf32> to vector<64x64xf32>
    %53 = arith.addf %50, %52 : vector<64x64xf32>
    %cst_23 = arith.constant 0.000000e+00 : f32
    %54 = vector.broadcast %cst_23 : f32 to vector<64x64xf32>
    %55 = arith.maximumf %53, %54 : vector<64x64xf32>
    %cst_24 = arith.constant dense<0.000000e+00> : vector<64xf32>
    %56 = vector.multi_reduction <add>, %55, %cst_24 [1] : vector<64x64xf32> to vector<64xf32>
    %57 = vector.shape_cast %56 : vector<64xf32> to vector<64x1xf32>
    %cst_25 = arith.constant 6.400000e+01 : f32
    %58 = vector.broadcast %cst_25 : f32 to vector<64x1xf32>
    %59 = arith.divf %57, %58 : vector<64x1xf32>
    %60 = vector.broadcast %59 : vector<64x1xf32> to vector<64x64xf32>
    %61 = arith.subf %55, %60 : vector<64x64xf32>
    %62 = arith.mulf %61, %61 : vector<64x64xf32>
    %cst_26 = arith.constant dense<0.000000e+00> : vector<64xf32>
    %63 = vector.multi_reduction <add>, %62, %cst_26 [1] : vector<64x64xf32> to vector<64xf32>
    %64 = vector.shape_cast %63 : vector<64xf32> to vector<64x1xf32>
    %cst_27 = arith.constant 6.400000e+01 : f32
    %65 = vector.broadcast %cst_27 : f32 to vector<64x1xf32>
    %66 = arith.divf %64, %65 : vector<64x1xf32>
    %67 = vector.broadcast %59 : vector<64x1xf32> to vector<64x64xf32>
    %68 = arith.subf %55, %67 : vector<64x64xf32>
    %cst_28 = arith.constant 9.99999974E-6 : f32
    %69 = vector.broadcast %cst_28 : f32 to vector<64x1xf32>
    %70 = arith.addf %66, %69 : vector<64x1xf32>
    %71 = math.rsqrt %70 : vector<64x1xf32>
    %72 = vector.broadcast %71 : vector<64x1xf32> to vector<64x64xf32>
    %73 = arith.mulf %68, %72 : vector<64x64xf32>
    %74 = vector.extract_strided_slice %73 {offsets = [0, 0], sizes = [16, 64], strides = [1, 1]} : vector<64x64xf32> to vector<16x64xf32>
    %75 = vector.extract_strided_slice %73 {offsets = [16, 0], sizes = [16, 64], strides = [1, 1]} : vector<64x64xf32> to vector<16x64xf32>
    %76 = arith.addf %74, %75 : vector<16x64xf32>
    %77 = vector.extract_strided_slice %73 {offsets = [32, 0], sizes = [16, 64], strides = [1, 1]} : vector<64x64xf32> to vector<16x64xf32>
    %78 = arith.addf %76, %77 : vector<16x64xf32>
    %79 = vector.extract_strided_slice %73 {offsets = [48, 0], sizes = [16, 64], strides = [1, 1]} : vector<64x64xf32> to vector<16x64xf32>
    %80 = arith.addf %78, %79 : vector<16x64xf32>
    %cst_29 = arith.constant 2.500000e-01 : f32
    %81 = vector.broadcast %cst_29 : f32 to vector<16x64xf32>
    %82 = arith.mulf %80, %81 : vector<16x64xf32>
    %83 = arith.truncf %82 : vector<16x64xf32> to vector<16x64xbf16>
    %c0_30 = arith.constant 0 : index
    %c0_31 = arith.constant 0 : index
    %84 = vector.load %arg11[%c0_30, %c0_31] : memref<64x128xbf16, #tpu.memory_space<vmem>>, vector<64x128xbf16>
    %cst_32 = arith.constant dense<0.000000e+00> : vector<16x128xf32>
    %85 = tpu.matmul %83, %84, %cst_32 {dimension_numbers = #tpu.dot_dimension_numbers<[1], [0], [0], [1], [0, 0, 1, 1], [], []>} : vector<16x64xbf16>, vector<64x128xbf16>, vector<16x128xf32> -> vector<16x128xf32>
    %c0_33 = arith.constant 0 : index
    %c0_34 = arith.constant 0 : index
    %86 = vector.load %arg6[%c0_33, %c0_34] : memref<32x32xbf16, #tpu.memory_space<vmem>>, vector<32x32xbf16>
    %cst_35 = arith.constant dense<0.000000e+00> : vector<64x32xf32>
    %87 = tpu.matmul %11, %86, %cst_35 {dimension_numbers = #tpu.dot_dimension_numbers<[1], [0], [0], [1], [0, 0, 1, 1], [], []>} : vector<64x32xbf16>, vector<32x32xbf16>, vector<64x32xf32> -> vector<64x32xf32>
    %c0_36 = arith.constant 0 : index
    %c0_37 = arith.constant 0 : index
    %88 = vector.load %arg7[%c0_36, %c0_37] : memref<1x32xf32, #tpu.memory_space<vmem>>, vector<1x32xf32>
    %89 = vector.broadcast %88 : vector<1x32xf32> to vector<64x32xf32>
    %90 = arith.addf %87, %89 : vector<64x32xf32>
    %c0_38 = arith.constant 0 : index
    %c0_39 = arith.constant 0 : index
    %91 = vector.load %arg8[%c0_38, %c0_39] : memref<1x32xf32, #tpu.memory_space<vmem>>, vector<1x32xf32>
    %c0_40 = arith.constant 0 : index
    %c0_41 = arith.constant 0 : index
    %92 = vector.load %arg9[%c0_40, %c0_41] : memref<1x32xf32, #tpu.memory_space<vmem>>, vector<1x32xf32>
    %cst_42 = arith.constant dense<0.000000e+00> : vector<64xf32>
    %93 = vector.multi_reduction <add>, %90, %cst_42 [1] : vector<64x32xf32> to vector<64xf32>
    %94 = vector.shape_cast %93 : vector<64xf32> to vector<64x1xf32>
    %cst_43 = arith.constant 3.200000e+01 : f32
    %95 = vector.broadcast %cst_43 : f32 to vector<64x1xf32>
    %96 = arith.divf %94, %95 : vector<64x1xf32>
    %97 = vector.broadcast %96 : vector<64x1xf32> to vector<64x32xf32>
    %98 = arith.subf %90, %97 : vector<64x32xf32>
    %99 = arith.mulf %98, %98 : vector<64x32xf32>
    %cst_44 = arith.constant dense<0.000000e+00> : vector<64xf32>
    %100 = vector.multi_reduction <add>, %99, %cst_44 [1] : vector<64x32xf32> to vector<64xf32>
    %101 = vector.shape_cast %100 : vector<64xf32> to vector<64x1xf32>
    %cst_45 = arith.constant 3.200000e+01 : f32
    %102 = vector.broadcast %cst_45 : f32 to vector<64x1xf32>
    %103 = arith.divf %101, %102 : vector<64x1xf32>
    %104 = vector.broadcast %96 : vector<64x1xf32> to vector<64x32xf32>
    %105 = arith.subf %90, %104 : vector<64x32xf32>
    %cst_46 = arith.constant 9.99999974E-6 : f32
    %106 = vector.broadcast %cst_46 : f32 to vector<64x1xf32>
    %107 = arith.addf %103, %106 : vector<64x1xf32>
    %108 = math.rsqrt %107 : vector<64x1xf32>
    %109 = vector.broadcast %108 : vector<64x1xf32> to vector<64x32xf32>
    %110 = arith.mulf %105, %109 : vector<64x32xf32>
    %111 = vector.broadcast %91 : vector<1x32xf32> to vector<64x32xf32>
    %112 = arith.mulf %110, %111 : vector<64x32xf32>
    %113 = vector.broadcast %92 : vector<1x32xf32> to vector<64x32xf32>
    %114 = arith.addf %112, %113 : vector<64x32xf32>
    %cst_47 = arith.constant 0.000000e+00 : f32
    %115 = vector.broadcast %cst_47 : f32 to vector<64x32xf32>
    %116 = arith.maximumf %114, %115 : vector<64x32xf32>
    %117 = arith.truncf %116 : vector<64x32xf32> to vector<64x32xbf16>
    %118 = vector.extract_strided_slice %117 {offsets = [0, 0], sizes = [16, 32], strides = [1, 1]} : vector<64x32xbf16> to vector<16x32xbf16>
    %119 = vector.extract_strided_slice %117 {offsets = [16, 0], sizes = [16, 32], strides = [1, 1]} : vector<64x32xbf16> to vector<16x32xbf16>
    %120 = vector.extract_strided_slice %117 {offsets = [32, 0], sizes = [16, 32], strides = [1, 1]} : vector<64x32xbf16> to vector<16x32xbf16>
    %121 = vector.extract_strided_slice %117 {offsets = [48, 0], sizes = [16, 32], strides = [1, 1]} : vector<64x32xbf16> to vector<16x32xbf16>
    %122 = tpu.concatenate %118, %119, %120, %121 in 1 : vector<16x32xbf16>, vector<16x32xbf16>, vector<16x32xbf16>, vector<16x32xbf16> -> vector<16x128xbf16>
    %c0_48 = arith.constant 0 : index
    %c0_49 = arith.constant 0 : index
    %123 = vector.load %arg10[%c0_48, %c0_49] : memref<128x128xbf16, #tpu.memory_space<vmem>>, vector<128x128xbf16>
    %cst_50 = arith.constant dense<0.000000e+00> : vector<16x128xf32>
    %124 = tpu.matmul %122, %123, %cst_50 {dimension_numbers = #tpu.dot_dimension_numbers<[1], [0], [0], [1], [0, 0, 1, 1], [], []>} : vector<16x128xbf16>, vector<128x128xbf16>, vector<16x128xf32> -> vector<16x128xf32>
    %125 = arith.addf %85, %124 : vector<16x128xf32>
    %c0_51 = arith.constant 0 : index
    %c0_52 = arith.constant 0 : index
    %126 = vector.load %arg12[%c0_51, %c0_52] : memref<1x128xf32, #tpu.memory_space<vmem>>, vector<1x128xf32>
    %127 = vector.broadcast %126 : vector<1x128xf32> to vector<16x128xf32>
    %128 = arith.addf %125, %127 : vector<16x128xf32>
    %c0_53 = arith.constant 0 : index
    %c0_54 = arith.constant 0 : index
    %129 = vector.load %arg13[%c0_53, %c0_54] : memref<16x128xf32, #tpu.memory_space<vmem>>, vector<16x128xf32>
    tpu.vector_store %arg13[%c0_53, %c0_54], %128 {strides = array<i32>} : memref<16x128xf32, #tpu.memory_space<vmem>>, vector<16x128xf32>,
    return
  }
  func.func @transform_0(%arg0: i32) -> (i32, i32, i32) {
    %c0_i32 = arith.constant 0 : i32
    %c0_i32_0 = arith.constant 0 : i32
    %c0_i32_1 = arith.constant 0 : i32
    return %c0_i32, %arg0, %c0_i32_0 : i32, i32, i32
  }
  func.func @transform_1(%arg0: i32) -> (i32, i32) {
    %c0_i32 = arith.constant 0 : i32
    %c0_i32_0 = arith.constant 0 : i32
    %c0_i32_1 = arith.constant 0 : i32
    return %c0_i32, %c0_i32_0 : i32, i32
  }
  func.func @transform_2(%arg0: i32) -> (i32, i32) {
    %c0_i32 = arith.constant 0 : i32
    %c0_i32_0 = arith.constant 0 : i32
    %c0_i32_1 = arith.constant 0 : i32
    return %c0_i32, %c0_i32_0 : i32, i32
  }
  func.func @transform_3(%arg0: i32) -> (i32, i32) {
    %c0_i32 = arith.constant 0 : i32
    %c0_i32_0 = arith.constant 0 : i32
    %c0_i32_1 = arith.constant 0 : i32
    return %c0_i32, %c0_i32_0 : i32, i32
  }
  func.func @transform_4(%arg0: i32) -> (i32, i32) {
    %c0_i32 = arith.constant 0 : i32
    %c0_i32_0 = arith.constant 0 : i32
    %c0_i32_1 = arith.constant 0 : i32
    return %c0_i32, %c0_i32_0 : i32, i32
  }
  func.func @transform_5(%arg0: i32) -> (i32, i32) {
    %c0_i32 = arith.constant 0 : i32
    %c0_i32_0 = arith.constant 0 : i32
    %c0_i32_1 = arith.constant 0 : i32
    return %c0_i32, %c0_i32_0 : i32, i32
  }
  func.func @transform_6(%arg0: i32) -> (i32, i32) {
    %c0_i32 = arith.constant 0 : i32
    %c0_i32_0 = arith.constant 0 : i32
    %c0_i32_1 = arith.constant 0 : i32
    return %c0_i32, %c0_i32_0 : i32, i32
  }
  func.func @transform_7(%arg0: i32) -> (i32, i32) {
    %c0_i32 = arith.constant 0 : i32
    %c0_i32_0 = arith.constant 0 : i32
    %c0_i32_1 = arith.constant 0 : i32
    return %c0_i32, %c0_i32_0 : i32, i32
  }
  func.func @transform_8(%arg0: i32) -> (i32, i32) {
    %c0_i32 = arith.constant 0 : i32
    %c0_i32_0 = arith.constant 0 : i32
    %c0_i32_1 = arith.constant 0 : i32
    return %c0_i32, %c0_i32_0 : i32, i32
  }
  func.func @transform_9(%arg0: i32) -> (i32, i32) {
    %c0_i32 = arith.constant 0 : i32
    %c0_i32_0 = arith.constant 0 : i32
    %c0_i32_1 = arith.constant 0 : i32
    return %c0_i32, %c0_i32_0 : i32, i32
  }
  func.func @transform_10(%arg0: i32) -> (i32, i32) {
    %c0_i32 = arith.constant 0 : i32
    %c0_i32_0 = arith.constant 0 : i32
    %c0_i32_1 = arith.constant 0 : i32
    return %c0_i32, %c0_i32_0 : i32, i32
  }
  func.func @transform_11(%arg0: i32) -> (i32, i32) {
    %c0_i32 = arith.constant 0 : i32
    %c0_i32_0 = arith.constant 0 : i32
    %c0_i32_1 = arith.constant 0 : i32
    return %c0_i32, %c0_i32_0 : i32, i32
  }
  func.func @transform_12(%arg0: i32) -> (i32, i32) {
    %c0_i32 = arith.constant 0 : i32
    %c0_i32_0 = arith.constant 0 : i32
    return %arg0, %c0_i32 : i32, i32
  }
}

</mosaic_0001>

<llo_original>
// kernel: tpu_custom_call.1
$region0: #{tpu_custom_call.1}
  #allocation0 [shape = 'u32[]', space=smem, size = 0x4, offset = 0x4, fixed_abs, tag = 'smem constant byte address 0x4 - core index']
  #allocation1 [shape = 'u32[144,128]{1,0:T(1,128)}', space=vmem, size = 0x12000, scoped, tag = 'internal scratch']
  %s0 = inlined_call_operand.vmem [shape: bf16[4,16,32], index: 0, kind: input, shape index: {}]
  %s1 = inlined_call_operand.hbm [shape: bf16[64,64], index: 1, kind: input, shape index: {}]
  %s2 = inlined_call_operand.vmem [shape: f32[1,64], index: 2, kind: input, shape index: {}]
  %s3 = inlined_call_operand.vmem [shape: bf16[128,64], index: 3, kind: input, shape index: {}]
  %s4 = inlined_call_operand.vmem [shape: f32[1,64], index: 4, kind: input, shape index: {}]
  %s5 = inlined_call_operand.hbm [shape: bf16[32,32], index: 5, kind: input, shape index: {}]
  %s6 = inlined_call_operand.hbm [shape: f32[1,32], index: 6, kind: input, shape index: {}]
  %s7 = inlined_call_operand.hbm [shape: f32[1,32], index: 7, kind: input, shape index: {}]
  %s8 = inlined_call_operand.hbm [shape: f32[1,32], index: 8, kind: input, shape index: {}]
  %s9 = inlined_call_operand.vmem [shape: bf16[128,128], index: 9, kind: input, shape index: {}]
  %s10 = inlined_call_operand.vmem [shape: bf16[64,128], index: 10, kind: input, shape index: {}]
  %s11 = inlined_call_operand.vmem [shape: f32[1,128], index: 11, kind: input, shape index: {}]
  %s12 = inlined_call_operand.hbm [shape: f32[16,128], index: 12, kind: output, shape index: {}]
  %s13 = sld [smem:[#allocation0]]
  $region78: #{tpu_custom_call.1} parent=0
    _
  %s15 = ssub.s32 1, %s13
  %s16 = scalar_select 0, %s15, %s13
  $region1: #{tpu_custom_call.1} parent=0
    #allocation2 [shape = 'u8[16384]{0}', space=vmem, size = 0x4000, scoped, tag = 'input window, operand 1, single buffered']
    #allocation3 [shape = 's32[1]{0}', space=sflag, size = 0x4, scoped, tag = 'scoped memory for tpu_custom_call.1']
    #allocation4 [shape = 's32[1]{0}', space=sflag, size = 0x4, scoped, tag = 'scoped memory for tpu_custom_call.1']
    #allocation5 [shape = 'u8[8192]{0}', space=vmem, size = 0x2000, scoped, tag = 'input window, operand 5, single buffered']
    #allocation6 [shape = 's32[1]{0}', space=sflag, size = 0x4, scoped, tag = 'scoped memory for tpu_custom_call.1']
    #allocation7 [shape = 'u8[512]{0}', space=vmem, size = 0x400, scoped, tag = 'input window, operand 6, single buffered']
    #allocation8 [shape = 'u8[512]{0}', space=vmem, size = 0x400, scoped, tag = 'input window, operand 7, single buffered']
    #allocation9 [shape = 's32[1]{0}', space=sflag, size = 0x4, scoped, tag = 'scoped memory for tpu_custom_call.1']
    #allocation10 [shape = 'u8[512]{0}', space=vmem, size = 0x400, scoped, tag = 'input window, operand 8, single buffered']
    #allocation11 [shape = 'u8[8192]{0}', space=vmem, size = 0x2000, scoped, tag = 'output window, operand 0, single buffered']
    %17 = vsyncpa [#allocation3], 0
    %18 = vsyncpa [#allocation6], 0
    %19 = vsyncpa [#allocation9], 0
    %20 = vsyncpa [#allocation4], 0
    // Predicated region
    $region2: #{tpu_custom_call.1} parent=1 // pred_check
      _
    $region3: #{tpu_custom_call.1} parent=1 // pred_check_branch
      %22 = sbr.rel (0) target = $region5
    $region4: #{tpu_custom_call.1} parent=1 // pred_region
      _
    $region5: #{tpu_custom_call.1} parent=1 // pred_fallthru
      _
    // Predicated region
    $region6: #{tpu_custom_call.1} parent=1 // pred_check
      _
    $region7: #{tpu_custom_call.1} parent=1 // pred_check_branch
      %24 = sbr.rel (0) target = $region9
    $region8: #{tpu_custom_call.1} parent=1 // pred_region
      %s26 = ssub.s32 512, 512
      %27 = vsyncadd [#allocation3], %s26
      %s28 = sshll.u32 [#allocation2], 4
      %s29 = int_to_ptr.vmem [resolvable:$true] %s28
      %34 = dma.hbm_to_vmem [thread:$0]  %s1, 512, %s29, [#allocation3], 64, 64, 4
    $region9: #{tpu_custom_call.1} parent=1 // pred_fallthru
      _
    // Predicated region
    $region10: #{tpu_custom_call.1} parent=1 // pred_check
      _
    $region11: #{tpu_custom_call.1} parent=1 // pred_check_branch
      %36 = sbr.rel (0) target = $region13
    $region12: #{tpu_custom_call.1} parent=1 // pred_region
      _
    $region13: #{tpu_custom_call.1} parent=1 // pred_fallthru
      _
    // Predicated region
    $region14: #{tpu_custom_call.1} parent=1 // pred_check
      _
    $region15: #{tpu_custom_call.1} parent=1 // pred_check_branch
      %38 = sbr.rel (0) target = $region17
    $region16: #{tpu_custom_call.1} parent=1 // pred_region
      _
    $region17: #{tpu_custom_call.1} parent=1 // pred_fallthru
      _
    // Predicated region
    $region18: #{tpu_custom_call.1} parent=1 // pred_check
      _
    $region19: #{tpu_custom_call.1} parent=1 // pred_check_branch
      %40 = sbr.rel (0) target = $region21
    $region20: #{tpu_custom_call.1} parent=1 // pred_region
      _
    $region21: #{tpu_custom_call.1} parent=1 // pred_fallthru
      _
    // Predicated region
    $region22: #{tpu_custom_call.1} parent=1 // pred_check
      _
    $region23: #{tpu_custom_call.1} parent=1 // pred_check_branch
      %42 = sbr.rel (0) target = $region25
    $region24: #{tpu_custom_call.1} parent=1 // pred_region
      %s44 = ssub.s32 256, 256
      %45 = vsyncadd [#allocation6], %s44
      %s46 = sshll.u32 [#allocation5], 4
      %s47 = int_to_ptr.vmem [resolvable:$true] %s46
      %52 = dma.hbm_to_vmem [thread:$0]  %s5, 256, %s47, [#allocation6], 64, 64, 4
    $region25: #{tpu_custom_call.1} parent=1 // pred_fallthru
      _
    // Predicated region
    $region26: #{tpu_custom_call.1} parent=1 // pred_check
      _
    $region27: #{tpu_custom_call.1} parent=1 // pred_check_branch
      %54 = sbr.rel (0) target = $region29
    $region28: #{tpu_custom_call.1} parent=1 // pred_region
      %s56 = ssub.s32 16, 16
      %57 = vsyncadd [#allocation6], %s56
      %s59 = sshll.u32 [#allocation7], 4
      %s60 = int_to_ptr.vmem [resolvable:$true] %s59
      %62 = dma.hbm_to_vmem [thread:$0]  %s6, 16, %s60, [#allocation6]
    $region29: #{tpu_custom_call.1} parent=1 // pred_fallthru
      _
    // Predicated region
    $region30: #{tpu_custom_call.1} parent=1 // pred_check
      _
    $region31: #{tpu_custom_call.1} parent=1 // pred_check_branch
      %64 = sbr.rel (0) target = $region33
    $region32: #{tpu_custom_call.1} parent=1 // pred_region
      %s66 = ssub.s32 16, 16
      %67 = vsyncadd [#allocation9], %s66
      %s69 = sshll.u32 [#allocation8], 4
      %s70 = int_to_ptr.vmem [resolvable:$true] %s69
      %72 = dma.hbm_to_vmem [thread:$0]  %s7, 16, %s70, [#allocation9]
    $region33: #{tpu_custom_call.1} parent=1 // pred_fallthru
      _
    // Predicated region
    $region34: #{tpu_custom_call.1} parent=1 // pred_check
      _
    $region35: #{tpu_custom_call.1} parent=1 // pred_check_branch
      %74 = sbr.rel (0) target = $region37
    $region36: #{tpu_custom_call.1} parent=1 // pred_region
      %s76 = ssub.s32 16, 16
      %77 = vsyncadd [#allocation9], %s76
      %s79 = sshll.u32 [#allocation10], 4
      %s80 = int_to_ptr.vmem [resolvable:$true] %s79
      %82 = dma.hbm_to_vmem [thread:$0]  %s8, 16, %s80, [#allocation9]
    $region37: #{tpu_custom_call.1} parent=1 // pred_fallthru
      _
    // Predicated region
    $region38: #{tpu_custom_call.1} parent=1 // pred_check
      _
    $region39: #{tpu_custom_call.1} parent=1 // pred_check_branch
      %84 = sbr.rel (0) target = $region41
    $region40: #{tpu_custom_call.1} parent=1 // pred_region
      _
    $region41: #{tpu_custom_call.1} parent=1 // pred_fallthru
      _
    // Predicated region
    $region42: #{tpu_custom_call.1} parent=1 // pred_check
      _
    $region43: #{tpu_custom_call.1} parent=1 // pred_check_branch
      %86 = sbr.rel (0) target = $region45
    $region44: #{tpu_custom_call.1} parent=1 // pred_region
      _
    $region45: #{tpu_custom_call.1} parent=1 // pred_fallthru
      _
    // Predicated region
    $region46: #{tpu_custom_call.1} parent=1 // pred_check
      _
    $region47: #{tpu_custom_call.1} parent=1 // pred_check_branch
      %88 = sbr.rel (0) target = $region49
    $region48: #{tpu_custom_call.1} parent=1 // pred_region
      _
    $region49: #{tpu_custom_call.1} parent=1 // pred_fallthru
      _
    // Predicated region
    $region50: #{tpu_custom_call.1} parent=1 // pred_check
      _
    $region51: #{tpu_custom_call.1} parent=1 // pred_check_branch
      %90 = sbr.rel (0) target = $region53
    $region52: #{tpu_custom_call.1} parent=1 // pred_region
      %91 = dma.done [#allocation3], 512
    $region53: #{tpu_custom_call.1} parent=1 // pred_fallthru
      _
    // Predicated region
    $region54: #{tpu_custom_call.1} parent=1 // pred_check
      _
    $region55: #{tpu_custom_call.1} parent=1 // pred_check_branch
      %93 = sbr.rel (0) target = $region57
    $region56: #{tpu_custom_call.1} parent=1 // pred_region
      %94 = dma.done [#allocation6], 256
    $region57: #{tpu_custom_call.1} parent=1 // pred_fallthru
      _
    // Predicated region
    $region58: #{tpu_custom_call.1} parent=1 // pred_check
      _
    $region59: #{tpu_custom_call.1} parent=1 // pred_check_branch
      %96 = sbr.rel (0) target = $region61
    $region60: #{tpu_custom_call.1} parent=1 // pred_region
      %97 = dma.done [#allocation6], 16
    $region61: #{tpu_custom_call.1} parent=1 // pred_fallthru
      _
    // Predicated region
    $region62: #{tpu_custom_call.1} parent=1 // pred_check
      _
    $region63: #{tpu_custom_call.1} parent=1 // pred_check_branch
      %99 = sbr.rel (0) target = $region65
    $region64: #{tpu_custom_call.1} parent=1 // pred_region
      %100 = dma.done [#allocation9], 16
    $region65: #{tpu_custom_call.1} parent=1 // pred_fallthru
      _
    // Predicated region
    $region66: #{tpu_custom_call.1} parent=1 // pred_check
      _
    $region67: #{tpu_custom_call.1} parent=1 // pred_check_branch
      %102 = sbr.rel (0) target = $region69
    $region68: #{tpu_custom_call.1} parent=1 // pred_region
      %103 = dma.done [#allocation9], 16
    $region69: #{tpu_custom_call.1} parent=1 // pred_fallthru
      _
    %v105 = vld [vmem:[%s0] sm:$0xf]
    %v106 = vld [vmem:[%s0 + $0x4] sm:$0xf]
    %s107 = scalar_lea.vmem %s0, 8
    %v108 = vld [vmem:[%s107] sm:$0xf]
    %v109 = vld [vmem:[%s107 + $0x4] sm:$0xf]
    %s110 = scalar_lea.vmem %s0, 16
    %v111 = vld [vmem:[%s110] sm:$0xf]
    %v112 = vld [vmem:[%s110 + $0x4] sm:$0xf]
    %s113 = scalar_lea.vmem %s0, 24
    %v114 = vld [vmem:[%s113] sm:$0xf]
    %v115 = vld [vmem:[%s113 + $0x4] sm:$0xf]
    %v116 = vadd.bf16 %v105, %v108
    %v117 = vadd.bf16 %v106, %v109
    %v118 = vadd.bf16 %v116, %v111
    %v119 = vadd.bf16 %v117, %v112
    %v120 = vadd.bf16 %v118, %v114
    %v121 = vadd.bf16 %v119, %v115
    %v124 = vunpack.c.l.b16 %v105
    %v125 = vunpack.c.l.b16 %v106
    %v126 = vpack.c.b16 %v125, %v124
    %v129 = vunpack.c.l.b16 %v108
    %v130 = vunpack.c.l.b16 %v109
    %v131 = vpack.c.b16 %v130, %v129
    %v134 = vunpack.c.l.b16 %v111
    %v135 = vunpack.c.l.b16 %v112
    %v136 = vpack.c.b16 %v135, %v134
    %v139 = vunpack.c.l.b16 %v114
    %v140 = vunpack.c.l.b16 %v115
    %v141 = vpack.c.b16 %v140, %v139
    %v144 = vunpack.c.l.b16 %v120
    %v145 = vunpack.c.l.b16 %v121
    %v146 = vpack.c.b16 %v145, %v144
    %147 = vrot.lane.b32.xlu0 %v146, 32
    %v148 = vpop.permute.xlu0 %147
    %vm149 = vcmask 261120
    %v152 = vsel %vm149, %v126, %v148
    %v154 = vsel %vm149, %v131, %v148
    %v156 = vsel %vm149, %v136, %v148
    %v158 = vsel %vm149, %v141, %v148
    %v159 = vld [vmem:[#allocation2] sm:$0xf]
    %v160 = vld [vmem:[#allocation2 + $0x4] sm:$0xf]
    %v161 = vld [vmem:[#allocation2 + $0x8] sm:$0xf]
    %v162 = vld [vmem:[#allocation2 + $0xc] sm:$0xf]
    %v163 = vld [vmem:[#allocation2 + $0x10] sm:$0xf]
    %v164 = vld [vmem:[#allocation2 + $0x14] sm:$0xf]
    %v165 = vld [vmem:[#allocation2 + $0x18] sm:$0xf]
    %v166 = vld [vmem:[#allocation2 + $0x1c] sm:$0xf]
    %v167 = vld [vmem:[%s2] sm:$0x1]
    %v169 = vlaneseq
    %v170 = vshrl.u32 %v169, 7
    %v171 = vsub.s32 0, %v170
    %v172 = vrot.slane %v167, %v171
    %v182 = vunpack.c.l.b16 %v159
    %v183 = vunpack.c.l.b16 %v160
    %v184 = vunpack.c.l.b16 %v161
    %v185 = vunpack.c.l.b16 %v162
    %v186 = vunpack.c.l.b16 %v163
    %v187 = vunpack.c.l.b16 %v164
    %v188 = vunpack.c.l.b16 %v165
    %v189 = vunpack.c.l.b16 %v166
    %v190 = vpack.c.b16 %v183, %v182
    %v191 = vpack.c.b16 %v185, %v184
    %v192 = vpack.c.b16 %v187, %v186
    %v193 = vpack.c.b16 %v189, %v188
    %vm198 = vcmask 523264
    %v199 = vsel %vm198, %v152, 0
    %v201 = vsel %vm198, %v154, 0
    %v203 = vsel %vm198, %v156, 0
    %v205 = vsel %vm198, %v158, 0
    %207 = vmatprep.subr.bf16.mxu0 0
    %208 = vmatpush1.bf16.msra.mxu0 %v190
    %209 = vmatprep.subr.bf16.mxu0 0
    %210 = vmatpush1.bf16.msra.mxu0 %v191
    %211 = vmatprep.subr.bf16.mxu0 0
    %212 = vmatpush1.bf16.msra.mxu0 %v192
    %213 = vmatprep.subr.bf16.mxu0 0
    %214 = vmatpush1.bf16.msra.mxu0 %v193
    %215 = vmatprep.subr.bf16.mxu0 0
    %216 = vmatpush1.bf16.msra.mxu0 0
    %217 = vmatprep.subr.bf16.mxu0 0
    %218 = vmatpush1.bf16.msra.mxu0 0
    %219 = vmatprep.subr.bf16.mxu0 0
    %220 = vmatpush1.bf16.msra.mxu0 0
    %221 = vmatprep.subr.bf16.mxu0 0
    %222 = vmatpush1.bf16.msra.mxu0 0
    %223 = vmatprep.subr.bf16.mxu0 0
    %224 = vmatpush1.bf16.msra.mxu0 0
    %225 = vmatprep.subr.bf16.mxu0 0
    %226 = vmatpush1.bf16.msra.mxu0 0
    %227 = vmatprep.subr.bf16.mxu0 0
    %228 = vmatpush1.bf16.msra.mxu0 0
    %229 = vmatprep.subr.bf16.mxu0 0
    %230 = vmatpush1.bf16.msra.mxu0 0
    %231 = vmatprep.subr.bf16.mxu0 0
    %232 = vmatpush1.bf16.msra.mxu0 0
    %233 = vmatprep.subr.bf16.mxu0 0
    %234 = vmatpush1.bf16.msra.mxu0 0
    %235 = vmatprep.subr.bf16.mxu0 0
    %236 = vmatpush1.bf16.msra.mxu0 0
    %237 = vmatprep.subr.bf16.mxu0 0
    %238 = vmatpush1.bf16.msra.mxu0 0
    %239 = vmatprep.mubr.bf16.mxu0 0
    %240 = vmatmul.mubr.bf16.gmra.mrb[0].mxu0 %v199
    %v241 = vpop.f32.mrb[0].mxu0
    %v242 = vadd.f32 %v172, %v241
    %v243 = vpop.f32.mrb[0].mxu0
    %v244 = vpop.f32.mrb[0].mxu0
    %v245 = vadd.f32 %v172, %v244
    %v246 = vpop.f32.mrb[0].mxu0
    %247 = vmatprep.mubr.bf16.mxu0 0
    %248 = vmatmul.mubr.bf16.gmra.mrb[0].mxu0 %v201
    %v249 = vpop.f32.mrb[0].mxu0
    %v250 = vadd.f32 %v172, %v249
    %v251 = vpop.f32.mrb[0].mxu0
    %v252 = vpop.f32.mrb[0].mxu0
    %v253 = vadd.f32 %v172, %v252
    %v254 = vpop.f32.mrb[0].mxu0
    %255 = vmatprep.mubr.bf16.mxu0 0
    %256 = vmatmul.mubr.bf16.gmra.mrb[0].mxu0 %v203
    %v257 = vpop.f32.mrb[0].mxu0
    %v258 = vadd.f32 %v172, %v257
    %v259 = vpop.f32.mrb[0].mxu0
    %v260 = vpop.f32.mrb[0].mxu0
    %v261 = vadd.f32 %v172, %v260
    %v262 = vpop.f32.mrb[0].mxu0
    %263 = vmatprep.mubr.bf16.mxu0 0
    %264 = vmatmul.mubr.bf16.gmra.mrb[0].mxu0 %v205
    %v265 = vpop.f32.mrb[0].mxu0
    %v266 = vadd.f32 %v172, %v265
    %v267 = vpop.f32.mrb[0].mxu0
    %v268 = vpop.f32.mrb[0].mxu0
    %v269 = vadd.f32 %v172, %v268
    %v270 = vpop.f32.mrb[0].mxu0
    %271 = vdwg.mxu0
    %v272 = vmax.f32 %v242, 0.0
    %v273 = vmax.f32 %v245, 0.0
    %v274 = vmax.f32 %v250, 0.0
    %v275 = vmax.f32 %v253, 0.0
    %v276 = vmax.f32 %v258, 0.0
    %v277 = vmax.f32 %v261, 0.0
    %v278 = vmax.f32 %v266, 0.0
    %v279 = vmax.f32 %v269, 0.0
    %v280 = vsel %vm198, %v272, 0.0
    %281 = vadd.xlane.f32.xlu0 %v280
    %v282 = vpop.xlane.xlu0 %281
    %v283 = vsel %vm198, %v273, 0.0
    %284 = vadd.xlane.f32.xlu0 %v283
    %v285 = vpop.xlane.xlu0 %284
    %v286 = vsel %vm198, %v274, 0.0
    %287 = vadd.xlane.f32.xlu0 %v286
    %v288 = vpop.xlane.xlu0 %287
    %v289 = vsel %vm198, %v275, 0.0
    %290 = vadd.xlane.f32.xlu0 %v289
    %v291 = vpop.xlane.xlu0 %290
    %v292 = vsel %vm198, %v276, 0.0
    %293 = vadd.xlane.f32.xlu0 %v292
    %v294 = vpop.xlane.xlu0 %293
    %v295 = vsel %vm198, %v277, 0.0
    %296 = vadd.xlane.f32.xlu0 %v295
    %v297 = vpop.xlane.xlu0 %296
    %v298 = vsel %vm198, %v278, 0.0
    %299 = vadd.xlane.f32.xlu0 %v298
    %v300 = vpop.xlane.xlu0 %299
    %v301 = vsel %vm198, %v279, 0.0
    %302 = vadd.xlane.f32.xlu0 %v301
    %v303 = vpop.xlane.xlu0 %302
    %v304 = vrcp.pop 64.0
    %v305 = vmul.f32 %v282, %v304
    %v306 = vmul.f32 %v285, %v304
    %v307 = vmul.f32 %v288, %v304
    %v308 = vmul.f32 %v291, %v304
    %v309 = vmul.f32 %v294, %v304
    %v310 = vmul.f32 %v297, %v304
    %v311 = vmul.f32 %v300, %v304
    %v312 = vmul.f32 %v303, %v304
    %v313 = vsub.f32 %v272, %v305
    %v314 = vsub.f32 %v273, %v306
    %v315 = vsub.f32 %v274, %v307
    %v316 = vsub.f32 %v275, %v308
    %v317 = vsub.f32 %v276, %v309
    %v318 = vsub.f32 %v277, %v310
    %v319 = vsub.f32 %v278, %v311
    %v320 = vsub.f32 %v279, %v312
    %v321 = vmul.f32 %v313, %v313
    %v322 = vmul.f32 %v314, %v314
    %v323 = vmul.f32 %v315, %v315
    %v324 = vmul.f32 %v316, %v316
    %v325 = vmul.f32 %v317, %v317
    %v326 = vmul.f32 %v318, %v318
    %v327 = vmul.f32 %v319, %v319
    %v328 = vmul.f32 %v320, %v320
    %v329 = vsel %vm198, %v321, 0.0
    %330 = vadd.xlane.f32.xlu0 %v329
    %v331 = vpop.xlane.xlu0 %330
    %v332 = vsel %vm198, %v322, 0.0
    %333 = vadd.xlane.f32.xlu0 %v332
    %v334 = vpop.xlane.xlu0 %333
    %v335 = vsel %vm198, %v323, 0.0
    %336 = vadd.xlane.f32.xlu0 %v335
    %v337 = vpop.xlane.xlu0 %336
    %v338 = vsel %vm198, %v324, 0.0
    %339 = vadd.xlane.f32.xlu0 %v338
    %v340 = vpop.xlane.xlu0 %339
    %v341 = vsel %vm198, %v325, 0.0
    %342 = vadd.xlane.f32.xlu0 %v341
    %v343 = vpop.xlane.xlu0 %342
    %v344 = vsel %vm198, %v326, 0.0
    %345 = vadd.xlane.f32.xlu0 %v344
    %v346 = vpop.xlane.xlu0 %345
    %v347 = vsel %vm198, %v327, 0.0
    %348 = vadd.xlane.f32.xlu0 %v347
    %v349 = vpop.xlane.xlu0 %348
    %v350 = vsel %vm198, %v328, 0.0
    %351 = vadd.xlane.f32.xlu0 %v350
    %v352 = vpop.xlane.xlu0 %351
    %v353 = vmul.f32 %v331, %v304
    %v354 = vmul.f32 %v334, %v304
    %v355 = vmul.f32 %v337, %v304
    %v356 = vmul.f32 %v340, %v304
    %v357 = vmul.f32 %v343, %v304
    %v358 = vmul.f32 %v346, %v304
    %v359 = vmul.f32 %v349, %v304
    %v360 = vmul.f32 %v352, %v304
    %v361 = vadd.f32 %v353, 1e-05
    %v362 = vadd.f32 %v354, 1e-05
    %v363 = vadd.f32 %v355, 1e-05
    %v364 = vadd.f32 %v356, 1e-05
    %v365 = vadd.f32 %v357, 1e-05
    %v366 = vadd.f32 %v358, 1e-05
    %v367 = vadd.f32 %v359, 1e-05
    %v368 = vadd.f32 %v360, 1e-05
    %v369 = vrsqrt.pop %v361
    %v370 = vrsqrt.pop %v362
    %v371 = vrsqrt.pop %v363
    %v372 = vrsqrt.pop %v364
    %v373 = vrsqrt.pop %v365
    %v374 = vrsqrt.pop %v366
    %v375 = vrsqrt.pop %v367
    %v376 = vrsqrt.pop %v368
    %v377 = vmul.f32 %v313, %v369
    %v378 = vmul.f32 %v314, %v370
    %v379 = vmul.f32 %v315, %v371
    %v380 = vmul.f32 %v316, %v372
    %v381 = vmul.f32 %v317, %v373
    %v382 = vmul.f32 %v318, %v374
    %v383 = vmul.f32 %v319, %v375
    %v384 = vmul.f32 %v320, %v376
    %v385 = vpack.c.bf16 %v378, %v377
    %v386 = vpack.c.bf16 %v380, %v379
    %v387 = vpack.c.bf16 %v382, %v381
    %v388 = vpack.c.bf16 %v384, %v383
    %v389 = vadd.bf16 %v385, %v386
    %v390 = vadd.bf16 %v389, %v387
    %v391 = vadd.bf16 %v390, %v388
    %393 = vrot.lane.b32.xlu0 %v391, 64
    %v394 = vpop.permute.xlu0 %393
    %v397 = vsel %vm198, %v385, %v394
    %v400 = vsel %vm198, %v386, %v394
    %v403 = vsel %vm198, %v387, %v394
    %v406 = vsel %vm198, %v388, %v394
    %v408 = vld [vmem:[%s3] sm:$0xf]
    %v409 = vld [vmem:[%s3 + $0x4] sm:$0xf]
    %v410 = vld [vmem:[%s3 + $0x8] sm:$0xf]
    %v411 = vld [vmem:[%s3 + $0xc] sm:$0xf]
    %v412 = vld [vmem:[%s3 + $0x10] sm:$0xf]
    %v413 = vld [vmem:[%s3 + $0x14] sm:$0xf]
    %v414 = vld [vmem:[%s3 + $0x18] sm:$0xf]
    %v415 = vld [vmem:[%s3 + $0x1c] sm:$0xf]
    %v416 = vld [vmem:[%s3 + $0x20] sm:$0xf]
    %v417 = vld [vmem:[%s3 + $0x24] sm:$0xf]
    %v418 = vld [vmem:[%s3 + $0x28] sm:$0xf]
    %v419 = vld [vmem:[%s3 + $0x2c] sm:$0xf]
    %v420 = vld [vmem:[%s3 + $0x30] sm:$0xf]
    %v421 = vld [vmem:[%s3 + $0x34] sm:$0xf]
    %v422 = vld [vmem:[%s3 + $0x38] sm:$0xf]
    %v423 = vld [vmem:[%s3 + $0x3c] sm:$0xf]
    %v424 = vld [vmem:[%s4] sm:$0x1]
    %v426 = vlaneseq
    %v427 = vshrl.u32 %v426, 7
    %v428 = vsub.s32 0, %v427
    %v429 = vrot.slane %v424, %v428
    %v447 = vunpack.c.l.b16 %v408
    %v448 = vunpack.c.l.b16 %v409
    %v449 = vunpack.c.l.b16 %v410
    %v450 = vunpack.c.l.b16 %v411
    %v451 = vunpack.c.l.b16 %v412
    %v452 = vunpack.c.l.b16 %v413
    %v453 = vunpack.c.l.b16 %v414
    %v454 = vunpack.c.l.b16 %v415
    %v455 = vunpack.c.l.b16 %v416
    %v456 = vunpack.c.l.b16 %v417
    %v457 = vunpack.c.l.b16 %v418
    %v458 = vunpack.c.l.b16 %v419
    %v459 = vunpack.c.l.b16 %v420
    %v460 = vunpack.c.l.b16 %v421
    %v461 = vunpack.c.l.b16 %v422
    %v462 = vunpack.c.l.b16 %v423
    %v463 = vpack.c.b16 %v448, %v447
    %v464 = vpack.c.b16 %v450, %v449
    %v465 = vpack.c.b16 %v452, %v451
    %v466 = vpack.c.b16 %v454, %v453
    %v467 = vpack.c.b16 %v456, %v455
    %v468 = vpack.c.b16 %v458, %v457
    %v469 = vpack.c.b16 %v460, %v459
    %v470 = vpack.c.b16 %v462, %v461
    %479 = vmatprep.subr.bf16.mxu0 0
    %480 = vmatpush1.bf16.msra.mxu0 %v463
    %481 = vmatprep.subr.bf16.mxu0 0
    %482 = vmatpush1.bf16.msra.mxu0 %v464
    %483 = vmatprep.subr.bf16.mxu0 0
    %484 = vmatpush1.bf16.msra.mxu0 %v465
    %485 = vmatprep.subr.bf16.mxu0 0
    %486 = vmatpush1.bf16.msra.mxu0 %v466
    %487 = vmatprep.subr.bf16.mxu0 0
    %488 = vmatpush1.bf16.msra.mxu0 %v467
    %489 = vmatprep.subr.bf16.mxu0 0
    %490 = vmatpush1.bf16.msra.mxu0 %v468
    %491 = vmatprep.subr.bf16.mxu0 0
    %492 = vmatpush1.bf16.msra.mxu0 %v469
    %493 = vmatprep.subr.bf16.mxu0 0
    %494 = vmatpush1.bf16.msra.mxu0 %v470
    %495 = vmatprep.subr.bf16.mxu0 0
    %496 = vmatpush1.bf16.msra.mxu0 0
    %497 = vmatprep.subr.bf16.mxu0 0
    %498 = vmatpush1.bf16.msra.mxu0 0
    %499 = vmatprep.subr.bf16.mxu0 0
    %500 = vmatpush1.bf16.msra.mxu0 0
    %501 = vmatprep.subr.bf16.mxu0 0
    %502 = vmatpush1.bf16.msra.mxu0 0
    %503 = vmatprep.subr.bf16.mxu0 0
    %504 = vmatpush1.bf16.msra.mxu0 0
    %505 = vmatprep.subr.bf16.mxu0 0
    %506 = vmatpush1.bf16.msra.mxu0 0
    %507 = vmatprep.subr.bf16.mxu0 0
    %508 = vmatpush1.bf16.msra.mxu0 0
    %509 = vmatprep.subr.bf16.mxu0 0
    %510 = vmatpush1.bf16.msra.mxu0 0
    %511 = vmatprep.mubr.bf16.mxu0 0
    %512 = vmatmul.mubr.bf16.gmra.mrb[0].mxu0 %v397
    %v513 = vpop.f32.mrb[0].mxu0
    %v514 = vadd.f32 %v429, %v513
    %v515 = vpop.f32.mrb[0].mxu0
    %v516 = vpop.f32.mrb[0].mxu0
    %v517 = vadd.f32 %v429, %v516
    %v518 = vpop.f32.mrb[0].mxu0
    %519 = vmatprep.mubr.bf16.mxu0 0
    %520 = vmatmul.mubr.bf16.gmra.mrb[0].mxu0 %v400
    %v521 = vpop.f32.mrb[0].mxu0
    %v522 = vadd.f32 %v429, %v521
    %v523 = vpop.f32.mrb[0].mxu0
    %v524 = vpop.f32.mrb[0].mxu0
    %v525 = vadd.f32 %v429, %v524
    %v526 = vpop.f32.mrb[0].mxu0
    %527 = vmatprep.mubr.bf16.mxu0 0
    %528 = vmatmul.mubr.bf16.gmra.mrb[0].mxu0 %v403
    %v529 = vpop.f32.mrb[0].mxu0
    %v530 = vadd.f32 %v429, %v529
    %v531 = vpop.f32.mrb[0].mxu0
    %v532 = vpop.f32.mrb[0].mxu0
    %v533 = vadd.f32 %v429, %v532
    %v534 = vpop.f32.mrb[0].mxu0
    %535 = vmatprep.mubr.bf16.mxu0 0
    %536 = vmatmul.mubr.bf16.gmra.mrb[0].mxu0 %v406
    %v537 = vpop.f32.mrb[0].mxu0
    %v538 = vadd.f32 %v429, %v537
    %v539 = vpop.f32.mrb[0].mxu0
    %v540 = vpop.f32.mrb[0].mxu0
    %v541 = vadd.f32 %v429, %v540
    %v542 = vpop.f32.mrb[0].mxu0
    %543 = vdwg.mxu0
    %v544 = vmax.f32 %v514, 0.0
    %v545 = vmax.f32 %v517, 0.0
    %v546 = vmax.f32 %v522, 0.0
    %v547 = vmax.f32 %v525, 0.0
    %v548 = vmax.f32 %v530, 0.0
    %v549 = vmax.f32 %v533, 0.0
    %v550 = vmax.f32 %v538, 0.0
    %v551 = vmax.f32 %v541, 0.0
    %v552 = vsel %vm198, %v544, 0.0
    %553 = vadd.xlane.f32.xlu0 %v552
    %v554 = vpop.xlane.xlu0 %553
    %v555 = vsel %vm198, %v545, 0.0
    %556 = vadd.xlane.f32.xlu0 %v555
    %v557 = vpop.xlane.xlu0 %556
    %v558 = vsel %vm198, %v546, 0.0
    %559 = vadd.xlane.f32.xlu0 %v558
    %v560 = vpop.xlane.xlu0 %559
    %v561 = vsel %vm198, %v547, 0.0
    %562 = vadd.xlane.f32.xlu0 %v561
    %v563 = vpop.xlane.xlu0 %562
    %v564 = vsel %vm198, %v548, 0.0
    %565 = vadd.xlane.f32.xlu0 %v564
    %v566 = vpop.xlane.xlu0 %565
    %v567 = vsel %vm198, %v549, 0.0
    %568 = vadd.xlane.f32.xlu0 %v567
    %v569 = vpop.xlane.xlu0 %568
    %v570 = vsel %vm198, %v550, 0.0
    %571 = vadd.xlane.f32.xlu0 %v570
    %v572 = vpop.xlane.xlu0 %571
    %v573 = vsel %vm198, %v551, 0.0
    %574 = vadd.xlane.f32.xlu0 %v573
    %v575 = vpop.xlane.xlu0 %574
    %v576 = vmul.f32 %v554, %v304
    %v577 = vmul.f32 %v557, %v304
    %v578 = vmul.f32 %v560, %v304
    %v579 = vmul.f32 %v563, %v304
    %v580 = vmul.f32 %v566, %v304
    %v581 = vmul.f32 %v569, %v304
    %v582 = vmul.f32 %v572, %v304
    %v583 = vmul.f32 %v575, %v304
    %v584 = vsub.f32 %v544, %v576
    %v585 = vsub.f32 %v545, %v577
    %v586 = vsub.f32 %v546, %v578
    %v587 = vsub.f32 %v547, %v579
    %v588 = vsub.f32 %v548, %v580
    %v589 = vsub.f32 %v549, %v581
    %v590 = vsub.f32 %v550, %v582
    %v591 = vsub.f32 %v551, %v583
    %v592 = vmul.f32 %v584, %v584
    %v593 = vmul.f32 %v585, %v585
    %v594 = vmul.f32 %v586, %v586
    %v595 = vmul.f32 %v587, %v587
    %v596 = vmul.f32 %v588, %v588
    %v597 = vmul.f32 %v589, %v589
    %v598 = vmul.f32 %v590, %v590
    %v599 = vmul.f32 %v591, %v591
    %v600 = vsel %vm198, %v592, 0.0
    %601 = vadd.xlane.f32.xlu0 %v600
    %v602 = vpop.xlane.xlu0 %601
    %v603 = vsel %vm198, %v593, 0.0
    %604 = vadd.xlane.f32.xlu0 %v603
    %v605 = vpop.xlane.xlu0 %604
    %v606 = vsel %vm198, %v594, 0.0
    %607 = vadd.xlane.f32.xlu0 %v606
    %v608 = vpop.xlane.xlu0 %607
    %v609 = vsel %vm198, %v595, 0.0
    %610 = vadd.xlane.f32.xlu0 %v609
    %v611 = vpop.xlane.xlu0 %610
    %v612 = vsel %vm198, %v596, 0.0
    %613 = vadd.xlane.f32.xlu0 %v612
    %v614 = vpop.xlane.xlu0 %613
    %v615 = vsel %vm198, %v597, 0.0
    %616 = vadd.xlane.f32.xlu0 %v615
    %v617 = vpop.xlane.xlu0 %616
    %v618 = vsel %vm198, %v598, 0.0
    %619 = vadd.xlane.f32.xlu0 %v618
    %v620 = vpop.xlane.xlu0 %619
    %v621 = vsel %vm198, %v599, 0.0
    %622 = vadd.xlane.f32.xlu0 %v621
    %v623 = vpop.xlane.xlu0 %622
    %v624 = vmul.f32 %v602, %v304
    %v625 = vmul.f32 %v605, %v304
    %v626 = vmul.f32 %v608, %v304
    %v627 = vmul.f32 %v611, %v304
    %v628 = vmul.f32 %v614, %v304
    %v629 = vmul.f32 %v617, %v304
    %v630 = vmul.f32 %v620, %v304
    %v631 = vmul.f32 %v623, %v304
    %v632 = vadd.f32 %v624, 1e-05
    %v633 = vadd.f32 %v625, 1e-05
    %v634 = vadd.f32 %v626, 1e-05
    %v635 = vadd.f32 %v627, 1e-05
    %v636 = vadd.f32 %v628, 1e-05
    %v637 = vadd.f32 %v629, 1e-05
    %v638 = vadd.f32 %v630, 1e-05
    %v639 = vadd.f32 %v631, 1e-05
    %v640 = vrsqrt.pop %v632
    %v641 = vrsqrt.pop %v633
    %v642 = vrsqrt.pop %v634
    %v643 = vrsqrt.pop %v635
    %v644 = vrsqrt.pop %v636
    %v645 = vrsqrt.pop %v637
    %v646 = vrsqrt.pop %v638
    %v647 = vrsqrt.pop %v639
    %v648 = vmul.f32 %v584, %v640
    %v649 = vmul.f32 %v585, %v641
    %v650 = vmul.f32 %v586, %v642
    %v651 = vmul.f32 %v587, %v643
    %v652 = vmul.f32 %v588, %v644
    %v653 = vmul.f32 %v589, %v645
    %v654 = vmul.f32 %v590, %v646
    %v655 = vmul.f32 %v591, %v647
    %v656 = vadd.f32 %v648, %v650
    %v657 = vadd.f32 %v649, %v651
    %v658 = vadd.f32 %v656, %v652
    %v659 = vadd.f32 %v657, %v653
    %v660 = vadd.f32 %v658, %v654
    %v661 = vadd.f32 %v659, %v655
    %v662 = vmul.f32 %v660, 0.25
    %v663 = vmul.f32 %v661, 0.25
    %v664 = vpack.c.bf16 %v663, %v662
    %v665 = vld [vmem:[%s10] sm:$0xf]
    %v666 = vld [vmem:[%s10 + $0x4] sm:$0xf]
    %v667 = vld [vmem:[%s10 + $0x8] sm:$0xf]
    %v668 = vld [vmem:[%s10 + $0xc] sm:$0xf]
    %v669 = vld [vmem:[%s10 + $0x10] sm:$0xf]
    %v670 = vld [vmem:[%s10 + $0x14] sm:$0xf]
    %v671 = vld [vmem:[%s10 + $0x18] sm:$0xf]
    %v672 = vld [vmem:[%s10 + $0x1c] sm:$0xf]
    %v673 = vld [vmem:[#allocation5] sm:$0xf]
    %v674 = vld [vmem:[#allocation5 + $0x4] sm:$0xf]
    %v675 = vld [vmem:[#allocation5 + $0x8] sm:$0xf]
    %v676 = vld [vmem:[#allocation5 + $0xc] sm:$0xf]
    %v677 = vld [vmem:[#allocation7] sm:$0x1]
    %v679 = vlaneseq
    %v680 = vshrl.u32 %v679, 7
    %v681 = vsub.s32 0, %v680
    %v682 = vrot.slane %v677, %v681
    %v688 = vunpack.c.l.b16 %v673
    %v689 = vunpack.c.l.b16 %v674
    %v690 = vunpack.c.l.b16 %v675
    %v691 = vunpack.c.l.b16 %v676
    %v692 = vpack.c.b16 %v689, %v688
    %v693 = vpack.c.b16 %v691, %v690
    %v696 = vsel %vm149, %v126, 0
    %v698 = vsel %vm149, %v131, 0
    %v700 = vsel %vm149, %v136, 0
    %v702 = vsel %vm149, %v141, 0
    %704 = vmatprep.subr.bf16.mxu0 0
    %705 = vmatpush1.bf16.msra.mxu0 %v692
    %706 = vmatprep.subr.bf16.mxu0 0
    %707 = vmatpush1.bf16.msra.mxu0 %v693
    %708 = vmatprep.subr.bf16.mxu0 0
    %709 = vmatpush1.bf16.msra.mxu0 0
    %710 = vmatprep.subr.bf16.mxu0 0
    %711 = vmatpush1.bf16.msra.mxu0 0
    %712 = vmatprep.subr.bf16.mxu0 0
    %713 = vmatpush1.bf16.msra.mxu0 0
    %714 = vmatprep.subr.bf16.mxu0 0
    %715 = vmatpush1.bf16.msra.mxu0 0
    %716 = vmatprep.subr.bf16.mxu0 0
    %717 = vmatpush1.bf16.msra.mxu0 0
    %718 = vmatprep.subr.bf16.mxu0 0
    %719 = vmatpush1.bf16.msra.mxu0 0
    %720 = vmatprep.subr.bf16.mxu0 0
    %721 = vmatpush1.bf16.msra.mxu0 0
    %722 = vmatprep.subr.bf16.mxu0 0
    %723 = vmatpush1.bf16.msra.mxu0 0
    %724 = vmatprep.subr.bf16.mxu0 0
    %725 = vmatpush1.bf16.msra.mxu0 0
    %726 = vmatprep.subr.bf16.mxu0 0
    %727 = vmatpush1.bf16.msra.mxu0 0
    %728 = vmatprep.subr.bf16.mxu0 0
    %729 = vmatpush1.bf16.msra.mxu0 0
    %730 = vmatprep.subr.bf16.mxu0 0
    %731 = vmatpush1.bf16.msra.mxu0 0
    %732 = vmatprep.subr.bf16.mxu0 0
    %733 = vmatpush1.bf16.msra.mxu0 0
    %734 = vmatprep.subr.bf16.mxu0 0
    %735 = vmatpush1.bf16.msra.mxu0 0
    %736 = vmatprep.mubr.bf16.mxu0 0
    %737 = vmatmul.mubr.bf16.gmra.mrb[0].mxu0 %v696
    %v738 = vpop.f32.mrb[0].mxu0
    %v739 = vadd.f32 %v682, %v738
    %v740 = vpop.f32.mrb[0].mxu0
    %v741 = vpop.f32.mrb[0].mxu0
    %v742 = vadd.f32 %v682, %v741
    %v743 = vpop.f32.mrb[0].mxu0
    %744 = vmatprep.mubr.bf16.mxu0 0
    %745 = vmatmul.mubr.bf16.gmra.mrb[0].mxu0 %v698
    %v746 = vpop.f32.mrb[0].mxu0
    %v747 = vadd.f32 %v682, %v746
    %v748 = vpop.f32.mrb[0].mxu0
    %v749 = vpop.f32.mrb[0].mxu0
    %v750 = vadd.f32 %v682, %v749
    %v751 = vpop.f32.mrb[0].mxu0
    %752 = vmatprep.mubr.bf16.mxu0 0
    %753 = vmatmul.mubr.bf16.gmra.mrb[0].mxu0 %v700
    %v754 = vpop.f32.mrb[0].mxu0
    %v755 = vadd.f32 %v682, %v754
    %v756 = vpop.f32.mrb[0].mxu0
    %v757 = vpop.f32.mrb[0].mxu0
    %v758 = vadd.f32 %v682, %v757
    %v759 = vpop.f32.mrb[0].mxu0
    %760 = vmatprep.mubr.bf16.mxu0 0
    %761 = vmatmul.mubr.bf16.gmra.mrb[0].mxu0 %v702
    %v762 = vpop.f32.mrb[0].mxu0
    %v763 = vadd.f32 %v682, %v762
    %v764 = vpop.f32.mrb[0].mxu0
    %v765 = vpop.f32.mrb[0].mxu0
    %v766 = vadd.f32 %v682, %v765
    %v767 = vpop.f32.mrb[0].mxu0
    %768 = vdwg.mxu0
    %v769 = vld [vmem:[#allocation8] sm:$0x1]
    %v770 = vld [vmem:[#allocation10] sm:$0x1]
    %v771 = vsel %vm149, %v739, 0.0
    %772 = vadd.xlane.f32.xlu0 %v771
    %v773 = vpop.xlane.xlu0 %772
    %v774 = vsel %vm149, %v742, 0.0
    %775 = vadd.xlane.f32.xlu0 %v774
    %v776 = vpop.xlane.xlu0 %775
    %v777 = vsel %vm149, %v747, 0.0
    %778 = vadd.xlane.f32.xlu0 %v777
    %v779 = vpop.xlane.xlu0 %778
    %v780 = vsel %vm149, %v750, 0.0
    %781 = vadd.xlane.f32.xlu0 %v780
    %v782 = vpop.xlane.xlu0 %781
    %v783 = vsel %vm149, %v755, 0.0
    %784 = vadd.xlane.f32.xlu0 %v783
    %v785 = vpop.xlane.xlu0 %784
    %v786 = vsel %vm149, %v758, 0.0
    %787 = vadd.xlane.f32.xlu0 %v786
    %v788 = vpop.xlane.xlu0 %787
    %v789 = vsel %vm149, %v763, 0.0
    %790 = vadd.xlane.f32.xlu0 %v789
    %v791 = vpop.xlane.xlu0 %790
    %v792 = vsel %vm149, %v766, 0.0
    %793 = vadd.xlane.f32.xlu0 %v792
    %v794 = vpop.xlane.xlu0 %793
    %v795 = vrcp.pop 32.0
    %v796 = vmul.f32 %v773, %v795
    %v797 = vmul.f32 %v776, %v795
    %v798 = vmul.f32 %v779, %v795
    %v799 = vmul.f32 %v782, %v795
    %v800 = vmul.f32 %v785, %v795
    %v801 = vmul.f32 %v788, %v795
    %v802 = vmul.f32 %v791, %v795
    %v803 = vmul.f32 %v794, %v795
    %v804 = vsub.f32 %v739, %v796
    %v805 = vsub.f32 %v742, %v797
    %v806 = vsub.f32 %v747, %v798
    %v807 = vsub.f32 %v750, %v799
    %v808 = vsub.f32 %v755, %v800
    %v809 = vsub.f32 %v758, %v801
    %v810 = vsub.f32 %v763, %v802
    %v811 = vsub.f32 %v766, %v803
    %v812 = vmul.f32 %v804, %v804
    %v813 = vmul.f32 %v805, %v805
    %v814 = vmul.f32 %v806, %v806
    %v815 = vmul.f32 %v807, %v807
    %v816 = vmul.f32 %v808, %v808
    %v817 = vmul.f32 %v809, %v809
    %v818 = vmul.f32 %v810, %v810
    %v819 = vmul.f32 %v811, %v811
    %v820 = vsel %vm149, %v812, 0.0
    %821 = vadd.xlane.f32.xlu0 %v820
    %v822 = vpop.xlane.xlu0 %821
    %v823 = vsel %vm149, %v813, 0.0
    %824 = vadd.xlane.f32.xlu0 %v823
    %v825 = vpop.xlane.xlu0 %824
    %v826 = vsel %vm149, %v814, 0.0
    %827 = vadd.xlane.f32.xlu0 %v826
    %v828 = vpop.xlane.xlu0 %827
    %v829 = vsel %vm149, %v815, 0.0
    %830 = vadd.xlane.f32.xlu0 %v829
    %v831 = vpop.xlane.xlu0 %830
    %v832 = vsel %vm149, %v816, 0.0
    %833 = vadd.xlane.f32.xlu0 %v832
    %v834 = vpop.xlane.xlu0 %833
    %v835 = vsel %vm149, %v817, 0.0
    %836 = vadd.xlane.f32.xlu0 %v835
    %v837 = vpop.xlane.xlu0 %836
    %v838 = vsel %vm149, %v818, 0.0
    %839 = vadd.xlane.f32.xlu0 %v838
    %v840 = vpop.xlane.xlu0 %839
    %v841 = vsel %vm149, %v819, 0.0
    %842 = vadd.xlane.f32.xlu0 %v841
    %v843 = vpop.xlane.xlu0 %842
    %v844 = vmul.f32 %v822, %v795
    %v845 = vmul.f32 %v825, %v795
    %v846 = vmul.f32 %v828, %v795
    %v847 = vmul.f32 %v831, %v795
    %v848 = vmul.f32 %v834, %v795
    %v849 = vmul.f32 %v837, %v795
    %v850 = vmul.f32 %v840, %v795
    %v851 = vmul.f32 %v843, %v795
    %v852 = vadd.f32 %v844, 1e-05
    %v853 = vadd.f32 %v845, 1e-05
    %v854 = vadd.f32 %v846, 1e-05
    %v855 = vadd.f32 %v847, 1e-05
    %v856 = vadd.f32 %v848, 1e-05
    %v857 = vadd.f32 %v849, 1e-05
    %v858 = vadd.f32 %v850, 1e-05
    %v859 = vadd.f32 %v851, 1e-05
    %v860 = vrsqrt.pop %v852
    %v861 = vrsqrt.pop %v853
    %v862 = vrsqrt.pop %v854
    %v863 = vrsqrt.pop %v855
    %v864 = vrsqrt.pop %v856
    %v865 = vrsqrt.pop %v857
    %v866 = vrsqrt.pop %v858
    %v867 = vrsqrt.pop %v859
    %v868 = vmul.f32 %v804, %v860
    %v869 = vmul.f32 %v805, %v861
    %v870 = vmul.f32 %v806, %v862
    %v871 = vmul.f32 %v807, %v863
    %v872 = vmul.f32 %v808, %v864
    %v873 = vmul.f32 %v809, %v865
    %v874 = vmul.f32 %v810, %v866
    %v875 = vmul.f32 %v811, %v867
    %v877 = vlaneseq
    %v878 = vshrl.u32 %v877, 7
    %v879 = vsub.s32 0, %v878
    %v880 = vrot.slane %v769, %v879
    %v882 = vmul.f32 %v868, %v880
    %v883 = vmul.f32 %v869, %v880
    %v884 = vmul.f32 %v870, %v880
    %v885 = vmul.f32 %v871, %v880
    %v886 = vmul.f32 %v872, %v880
    %v887 = vmul.f32 %v873, %v880
    %v888 = vmul.f32 %v874, %v880
    %v889 = vmul.f32 %v875, %v880
    %v891 = vlaneseq
    %v892 = vshrl.u32 %v891, 7
    %v893 = vsub.s32 0, %v892
    %v894 = vrot.slane %v770, %v893
    %v896 = vadd.f32 %v882, %v894
    %v897 = vadd.f32 %v883, %v894
    %v898 = vadd.f32 %v884, %v894
    %v899 = vadd.f32 %v885, %v894
    %v900 = vadd.f32 %v886, %v894
    %v901 = vadd.f32 %v887, %v894
    %v902 = vadd.f32 %v888, %v894
    %v903 = vadd.f32 %v889, %v894
    %v904 = vmax.f32 %v896, 0.0
    %v905 = vmax.f32 %v897, 0.0
    %v906 = vmax.f32 %v898, 0.0
    %v907 = vmax.f32 %v899, 0.0
    %v908 = vmax.f32 %v900, 0.0
    %v909 = vmax.f32 %v901, 0.0
    %v910 = vmax.f32 %v902, 0.0
    %v911 = vmax.f32 %v903, 0.0
    %v912 = vpack.c.bf16 %v905, %v904
    %v913 = vpack.c.bf16 %v907, %v906
    %v914 = vpack.c.bf16 %v909, %v908
    %v915 = vpack.c.bf16 %v911, %v910
    %917 = vrot.lane.b32.xlu0 %v913, 32
    %v918 = vpop.permute.xlu0 %917
    %920 = vrot.lane.b32.xlu0 %v914, 64
    %v921 = vpop.permute.xlu0 %920
    %923 = vrot.lane.b32.xlu0 %v915, 96
    %v924 = vpop.permute.xlu0 %923
    %v927 = vsel %vm149, %v912, %v918
    %v929 = vsel %vm198, %v927, %v921
    %vm930 = vcmask 785408
    %v932 = vsel %vm930, %v929, %v924
    %v934 = vld [vmem:[%s9] sm:$0xf]
    %v935 = vld [vmem:[%s9 + $0x4] sm:$0xf]
    %v936 = vld [vmem:[%s9 + $0x8] sm:$0xf]
    %v937 = vld [vmem:[%s9 + $0xc] sm:$0xf]
    %v938 = vld [vmem:[%s9 + $0x10] sm:$0xf]
    %v939 = vld [vmem:[%s9 + $0x14] sm:$0xf]
    %v940 = vld [vmem:[%s9 + $0x18] sm:$0xf]
    %v941 = vld [vmem:[%s9 + $0x1c] sm:$0xf]
    %v942 = vld [vmem:[%s9 + $0x20] sm:$0xf]
    %v943 = vld [vmem:[%s9 + $0x24] sm:$0xf]
    %v944 = vld [vmem:[%s9 + $0x28] sm:$0xf]
    %v945 = vld [vmem:[%s9 + $0x2c] sm:$0xf]
    %v946 = vld [vmem:[%s9 + $0x30] sm:$0xf]
    %v947 = vld [vmem:[%s9 + $0x34] sm:$0xf]
    %v948 = vld [vmem:[%s9 + $0x38] sm:$0xf]
    %v949 = vld [vmem:[%s9 + $0x3c] sm:$0xf]
    %v966 = vunpack.c.l.b16 %v934
    %v967 = vunpack.c.l.b16 %v935
    %v968 = vunpack.c.l.b16 %v936
    %v969 = vunpack.c.l.b16 %v937
    %v970 = vunpack.c.l.b16 %v938
    %v971 = vunpack.c.l.b16 %v939
    %v972 = vunpack.c.l.b16 %v940
    %v973 = vunpack.c.l.b16 %v941
    %v974 = vunpack.c.l.b16 %v942
    %v975 = vunpack.c.l.b16 %v943
    %v976 = vunpack.c.l.b16 %v944
    %v977 = vunpack.c.l.b16 %v945
    %v978 = vunpack.c.l.b16 %v946
    %v979 = vunpack.c.l.b16 %v947
    %v980 = vunpack.c.l.b16 %v948
    %v981 = vunpack.c.l.b16 %v949
    %v982 = vpack.c.b16 %v967, %v966
    %v983 = vpack.c.b16 %v969, %v968
    %v984 = vpack.c.b16 %v971, %v970
    %v985 = vpack.c.b16 %v973, %v972
    %v986 = vpack.c.b16 %v975, %v974
    %v987 = vpack.c.b16 %v977, %v976
    %v988 = vpack.c.b16 %v979, %v978
    %v989 = vpack.c.b16 %v981, %v980
    %998 = vmatprep.subr.bf16.mxu0 0
    %999 = vmatpush1.bf16.msra.mxu0 %v982
    %1000 = vmatprep.subr.bf16.mxu0 0
    %1001 = vmatpush1.bf16.msra.mxu0 %v983
    %1002 = vmatprep.subr.bf16.mxu0 0
    %1003 = vmatpush1.bf16.msra.mxu0 %v984
    %1004 = vmatprep.subr.bf16.mxu0 0
    %1005 = vmatpush1.bf16.msra.mxu0 %v985
    %1006 = vmatprep.subr.bf16.mxu0 0
    %1007 = vmatpush1.bf16.msra.mxu0 %v986
    %1008 = vmatprep.subr.bf16.mxu0 0
    %1009 = vmatpush1.bf16.msra.mxu0 %v987
    %1010 = vmatprep.subr.bf16.mxu0 0
    %1011 = vmatpush1.bf16.msra.mxu0 %v988
    %1012 = vmatprep.subr.bf16.mxu0 0
    %1013 = vmatpush1.bf16.msra.mxu0 %v989
    %1014 = vmatprep.subr.bf16.mxu0 0
    %1015 = vmatpush1.bf16.msra.mxu0 0
    %1016 = vmatprep.subr.bf16.mxu0 0
    %1017 = vmatpush1.bf16.msra.mxu0 0
    %1018 = vmatprep.subr.bf16.mxu0 0
    %1019 = vmatpush1.bf16.msra.mxu0 0
    %1020 = vmatprep.subr.bf16.mxu0 0
    %1021 = vmatpush1.bf16.msra.mxu0 0
    %1022 = vmatprep.subr.bf16.mxu0 0
    %1023 = vmatpush1.bf16.msra.mxu0 0
    %1024 = vmatprep.subr.bf16.mxu0 0
    %1025 = vmatpush1.bf16.msra.mxu0 0
    %1026 = vmatprep.subr.bf16.mxu0 0
    %1027 = vmatpush1.bf16.msra.mxu0 0
    %1028 = vmatprep.subr.bf16.mxu0 0
    %1029 = vmatpush1.bf16.msra.mxu0 0
    %1030 = vmatprep.mubr.bf16.mxu0 0
    %1031 = vmatmul.mubr.bf16.gmra.mrb[0].mxu0 %v932
    %v1032 = vpop.f32.mrb[0].mxu0
    %v1033 = vadd.f32 0.0, %v1032
    %v1034 = vpop.f32.mrb[0].mxu0
    %v1035 = vpop.f32.mrb[0].mxu0
    %v1036 = vadd.f32 0.0, %v1035
    %v1037 = vpop.f32.mrb[0].mxu0
    %1038 = vdwg.mxu0
    %v1047 = vunpack.c.l.b16 %v665
    %v1048 = vunpack.c.l.b16 %v666
    %v1049 = vunpack.c.l.b16 %v667
    %v1050 = vunpack.c.l.b16 %v668
    %v1051 = vunpack.c.l.b16 %v669
    %v1052 = vunpack.c.l.b16 %v670
    %v1053 = vunpack.c.l.b16 %v671
    %v1054 = vunpack.c.l.b16 %v672
    %v1055 = vpack.c.b16 %v1048, %v1047
    %v1056 = vpack.c.b16 %v1050, %v1049
    %v1057 = vpack.c.b16 %v1052, %v1051
    %v1058 = vpack.c.b16 %v1054, %v1053
    %v1064 = vsel %vm198, %v664, 0
    %1066 = vmatprep.subr.bf16.mxu0 0
    %1067 = vmatpush1.bf16.msra.mxu0 %v1055
    %1068 = vmatprep.subr.bf16.mxu0 0
    %1069 = vmatpush1.bf16.msra.mxu0 %v1056
    %1070 = vmatprep.subr.bf16.mxu0 0
    %1071 = vmatpush1.bf16.msra.mxu0 %v1057
    %1072 = vmatprep.subr.bf16.mxu0 0
    %1073 = vmatpush1.bf16.msra.mxu0 %v1058
    %1074 = vmatprep.subr.bf16.mxu0 0
    %1075 = vmatpush1.bf16.msra.mxu0 0
    %1076 = vmatprep.subr.bf16.mxu0 0
    %1077 = vmatpush1.bf16.msra.mxu0 0
    %1078 = vmatprep.subr.bf16.mxu0 0
    %1079 = vmatpush1.bf16.msra.mxu0 0
    %1080 = vmatprep.subr.bf16.mxu0 0
    %1081 = vmatpush1.bf16.msra.mxu0 0
    %1082 = vmatprep.subr.bf16.mxu0 0
    %1083 = vmatpush1.bf16.msra.mxu0 0
    %1084 = vmatprep.subr.bf16.mxu0 0
    %1085 = vmatpush1.bf16.msra.mxu0 0
    %1086 = vmatprep.subr.bf16.mxu0 0
    %1087 = vmatpush1.bf16.msra.mxu0 0
    %1088 = vmatprep.subr.bf16.mxu0 0
    %1089 = vmatpush1.bf16.msra.mxu0 0
    %1090 = vmatprep.subr.bf16.mxu0 0
    %1091 = vmatpush1.bf16.msra.mxu0 0
    %1092 = vmatprep.subr.bf16.mxu0 0
    %1093 = vmatpush1.bf16.msra.mxu0 0
    %1094 = vmatprep.subr.bf16.mxu0 0
    %1095 = vmatpush1.bf16.msra.mxu0 0
    %1096 = vmatprep.subr.bf16.mxu0 0
    %1097 = vmatpush1.bf16.msra.mxu0 0
    %1098 = vmatprep.mubr.bf16.mxu0 0
    %1099 = vmatmul.mubr.bf16.gmra.mrb[0].mxu0 %v1064
    %v1100 = vpop.f32.mrb[0].mxu0
    %v1101 = vadd.f32 %v1033, %v1100
    %v1102 = vpop.f32.mrb[0].mxu0
    %v1103 = vpop.f32.mrb[0].mxu0
    %v1104 = vadd.f32 %v1036, %v1103
    %v1105 = vpop.f32.mrb[0].mxu0
    %1106 = vdwg.mxu0
    %v1107 = vld [vmem:[%s11] sm:$0x1]
    %v1109 = vlaneseq
    %v1110 = vshrl.u32 %v1109, 7
    %v1111 = vsub.s32 0, %v1110
    %v1112 = vrot.slane %v1107, %v1111
    %v1114 = vadd.f32 %v1101, %v1112
    %v1115 = vadd.f32 %v1104, %v1112
    %1116 = vst [vmem:[#allocation11] sm:$0xff] %v1114
    %1117 = vst [vmem:[#allocation11 + $0x8] sm:$0xff] %v1115
    // Predicated region
    $region70: #{tpu_custom_call.1} parent=1 // pred_check
      _
    $region71: #{tpu_custom_call.1} parent=1 // pred_check_branch
      %1119 = sbr.rel (0) target = $region73
    $region72: #{tpu_custom_call.1} parent=1 // pred_region
      %s1121 = ssub.s32 256, 256
      %1122 = vsyncadd [#allocation4], %s1121
      %s1123 = sshll.u32 [#allocation11], 4
      %s1124 = int_to_ptr.vmem [resolvable:$true] %s1123
      %1129 = dma.vmem_to_hbm [thread:$0]  %s1124, 256, %s12, [#allocation4], 128, 128, 8
    $region73: #{tpu_custom_call.1} parent=1 // pred_fallthru
      _
    // Predicated region
    $region74: #{tpu_custom_call.1} parent=1 // pred_check
      _
    $region75: #{tpu_custom_call.1} parent=1 // pred_check_branch
      %1131 = sbr.rel (0) target = $region77
    $region76: #{tpu_custom_call.1} parent=1 // pred_region
      %1132 = dma.done [#allocation4], 256
    $region77: #{tpu_custom_call.1} parent=1 // pred_fallthru
      _
    %1133 = vsyncpa [#allocation3], 1
    %1134 = vsyncpa [#allocation6], 1
    %1135 = vsyncpa [#allocation9], 1
    %1136 = vsyncpa [#allocation4], 1

// kernel: tpu_custom_call.1
$region0: #{tpu_custom_call.1}
  #allocation0 [shape = 'u32[]', space=smem, size = 0x4, offset = 0x4, fixed_abs, tag = 'smem constant byte address 0x4 - core index']
  #allocation1 [shape = 'u32[144,128]{1,0:T(1,128)}', space=vmem, size = 0x12000, scoped, tag = 'internal scratch']
  %s0 = inlined_call_operand.vmem [shape: bf16[4,16,32], index: 0, kind: input, shape index: {}]
  %s1 = inlined_call_operand.hbm [shape: bf16[64,64], index: 1, kind: input, shape index: {}]
  %s2 = inlined_call_operand.vmem [shape: f32[1,64], index: 2, kind: input, shape index: {}]
  %s3 = inlined_call_operand.vmem [shape: bf16[128,64], index: 3, kind: input, shape index: {}]
  %s4 = inlined_call_operand.vmem [shape: f32[1,64], index: 4, kind: input, shape index: {}]
  %s5 = inlined_call_operand.hbm [shape: bf16[32,32], index: 5, kind: input, shape index: {}]
  %s6 = inlined_call_operand.hbm [shape: f32[1,32], index: 6, kind: input, shape index: {}]
  %s7 = inlined_call_operand.hbm [shape: f32[1,32], index: 7, kind: input, shape index: {}]
  %s8 = inlined_call_operand.hbm [shape: f32[1,32], index: 8, kind: input, shape index: {}]
  %s9 = inlined_call_operand.vmem [shape: bf16[128,128], index: 9, kind: input, shape index: {}]
  %s10 = inlined_call_operand.vmem [shape: bf16[64,128], index: 10, kind: input, shape index: {}]
  %s11 = inlined_call_operand.vmem [shape: f32[1,128], index: 11, kind: input, shape index: {}]
  %s12 = inlined_call_operand.hbm [shape: f32[16,128], index: 12, kind: output, shape index: {}]
  %s13 = sld [smem:[#allocation0]]
  $region78: #{tpu_custom_call.1} parent=0
    _
  %s15 = ssub.s32 1, %s13
  %s16 = scalar_select 0, %s15, %s13
  $region1: #{tpu_custom_call.1} parent=0
    #allocation2 [shape = 'u8[16384]{0}', space=vmem, size = 0x4000, scoped, tag = 'input window, operand 1, single buffered']
    #allocation3 [shape = 's32[1]{0}', space=sflag, size = 0x4, scoped, tag = 'scoped memory for tpu_custom_call.1']
    #allocation4 [shape = 's32[1]{0}', space=sflag, size = 0x4, scoped, tag = 'scoped memory for tpu_custom_call.1']
    #allocation5 [shape = 'u8[8192]{0}', space=vmem, size = 0x2000, scoped, tag = 'input window, operand 5, single buffered']
    #allocation6 [shape = 's32[1]{0}', space=sflag, size = 0x4, scoped, tag = 'scoped memory for tpu_custom_call.1']
    #allocation7 [shape = 'u8[512]{0}', space=vmem, size = 0x400, scoped, tag = 'input window, operand 6, single buffered']
    #allocation8 [shape = 'u8[512]{0}', space=vmem, size = 0x400, scoped, tag = 'input window, operand 7, single buffered']
    #allocation9 [shape = 's32[1]{0}', space=sflag, size = 0x4, scoped, tag = 'scoped memory for tpu_custom_call.1']
    #allocation10 [shape = 'u8[512]{0}', space=vmem, size = 0x400, scoped, tag = 'input window, operand 8, single buffered']
    #allocation11 [shape = 'u8[8192]{0}', space=vmem, size = 0x2000, scoped, tag = 'output window, operand 0, single buffered']
    %17 = vsyncpa [#allocation3], 0
    %18 = vsyncpa [#allocation6], 0
    %19 = vsyncpa [#allocation9], 0
    %20 = vsyncpa [#allocation4], 0
    // Predicated region
    $region2: #{tpu_custom_call.1} parent=1 // pred_check
      _
    $region3: #{tpu_custom_call.1} parent=1 // pred_check_branch
      %22 = sbr.rel (0) target = $region5
    $region4: #{tpu_custom_call.1} parent=1 // pred_region
      _
    $region5: #{tpu_custom_call.1} parent=1 // pred_fallthru
      _
    // Predicated region
    $region6: #{tpu_custom_call.1} parent=1 // pred_check
      _
    $region7: #{tpu_custom_call.1} parent=1 // pred_check_branch
      %24 = sbr.rel (0) target = $region9
    $region8: #{tpu_custom_call.1} parent=1 // pred_region
      %s26 = ssub.s32 512, 512
      %27 = vsyncadd [#allocation3], %s26
      %s28 = sshll.u32 [#allocation2], 4
      %s29 = int_to_ptr.vmem [resolvable:$true] %s28
      %34 = dma.hbm_to_vmem [thread:$0]  %s1, 512, %s29, [#allocation3], 64, 64, 4
    $region9: #{tpu_custom_call.1} parent=1 // pred_fallthru
      _
    // Predicated region
    $region10: #{tpu_custom_call.1} parent=1 // pred_check
      _
    $region11: #{tpu_custom_call.1} parent=1 // pred_check_branch
      %36 = sbr.rel (0) target = $region13
    $region12: #{tpu_custom_call.1} parent=1 // pred_region
      _
    $region13: #{tpu_custom_call.1} parent=1 // pred_fallthru
      _
    // Predicated region
    $region14: #{tpu_custom_call.1} parent=1 // pred_check
      _
    $region15: #{tpu_custom_call.1} parent=1 // pred_check_branch
      %38 = sbr.rel (0) target = $region17
    $region16: #{tpu_custom_call.1} parent=1 // pred_region
      _
    $region17: #{tpu_custom_call.1} parent=1 // pred_fallthru
      _
    // Predicated region
    $region18: #{tpu_custom_call.1} parent=1 // pred_check
      _
    $region19: #{tpu_custom_call.1} parent=1 // pred_check_branch
      %40 = sbr.rel (0) target = $region21
    $region20: #{tpu_custom_call.1} parent=1 // pred_region
      _
    $region21: #{tpu_custom_call.1} parent=1 // pred_fallthru
      _
    // Predicated region
    $region22: #{tpu_custom_call.1} parent=1 // pred_check
      _
    $region23: #{tpu_custom_call.1} parent=1 // pred_check_branch
      %42 = sbr.rel (0) target = $region25
    $region24: #{tpu_custom_call.1} parent=1 // pred_region
      %s44 = ssub.s32 256, 256
      %45 = vsyncadd [#allocation6], %s44
      %s46 = sshll.u32 [#allocation5], 4
      %s47 = int_to_ptr.vmem [resolvable:$true] %s46
      %52 = dma.hbm_to_vmem [thread:$0]  %s5, 256, %s47, [#allocation6], 64, 64, 4
    $region25: #{tpu_custom_call.1} parent=1 // pred_fallthru
      _
    // Predicated region
    $region26: #{tpu_custom_call.1} parent=1 // pred_check
      _
    $region27: #{tpu_custom_call.1} parent=1 // pred_check_branch
      %54 = sbr.rel (0) target = $region29
    $region28: #{tpu_custom_call.1} parent=1 // pred_region
      %s56 = ssub.s32 16, 16
      %57 = vsyncadd [#allocation6], %s56
      %s59 = sshll.u32 [#allocation7], 4
      %s60 = int_to_ptr.vmem [resolvable:$true] %s59
      %62 = dma.hbm_to_vmem [thread:$0]  %s6, 16, %s60, [#allocation6]
    $region29: #{tpu_custom_call.1} parent=1 // pred_fallthru
      _
    // Predicated region
    $region30: #{tpu_custom_call.1} parent=1 // pred_check
      _
    $region31: #{tpu_custom_call.1} parent=1 // pred_check_branch
      %64 = sbr.rel (0) target = $region33
    $region32: #{tpu_custom_call.1} parent=1 // pred_region
      %s66 = ssub.s32 16, 16
      %67 = vsyncadd [#allocation9], %s66
      %s69 = sshll.u32 [#allocation8], 4
      %s70 = int_to_ptr.vmem [resolvable:$true] %s69
      %72 = dma.hbm_to_vmem [thread:$0]  %s7, 16, %s70, [#allocation9]
    $region33: #{tpu_custom_call.1} parent=1 // pred_fallthru
      _
    // Predicated region
    $region34: #{tpu_custom_call.1} parent=1 // pred_check
      _
    $region35: #{tpu_custom_call.1} parent=1 // pred_check_branch
      %74 = sbr.rel (0) target = $region37
    $region36: #{tpu_custom_call.1} parent=1 // pred_region
      %s76 = ssub.s32 16, 16
      %77 = vsyncadd [#allocation9], %s76
      %s79 = sshll.u32 [#allocation10], 4
      %s80 = int_to_ptr.vmem [resolvable:$true] %s79
      %82 = dma.hbm_to_vmem [thread:$0]  %s8, 16, %s80, [#allocation9]
    $region37: #{tpu_custom_call.1} parent=1 // pred_fallthru
      _
    // Predicated region
    $region38: #{tpu_custom_call.1} parent=1 // pred_check
      _
    $region39: #{tpu_custom_call.1} parent=1 // pred_check_branch
      %84 = sbr.rel (0) target = $region41
    $region40: #{tpu_custom_call.1} parent=1 // pred_region
      _
    $region41: #{tpu_custom_call.1} parent=1 // pred_fallthru
      _
    // Predicated region
    $region42: #{tpu_custom_call.1} parent=1 // pred_check
      _
    $region43: #{tpu_custom_call.1} parent=1 // pred_check_branch
      %86 = sbr.rel (0) target = $region45
    $region44: #{tpu_custom_call.1} parent=1 // pred_region
      _
    $region45: #{tpu_custom_call.1} parent=1 // pred_fallthru
      _
    // Predicated region
    $region46: #{tpu_custom_call.1} parent=1 // pred_check
      _
    $region47: #{tpu_custom_call.1} parent=1 // pred_check_branch
      %88 = sbr.rel (0) target = $region49
    $region48: #{tpu_custom_call.1} parent=1 // pred_region
      _
    $region49: #{tpu_custom_call.1} parent=1 // pred_fallthru
      _
    // Predicated region
    $region50: #{tpu_custom_call.1} parent=1 // pred_check
      _
    $region51: #{tpu_custom_call.1} parent=1 // pred_check_branch
      %90 = sbr.rel (0) target = $region53
    $region52: #{tpu_custom_call.1} parent=1 // pred_region
      %91 = dma.done [#allocation3], 512
    $region53: #{tpu_custom_call.1} parent=1 // pred_fallthru
      _
    // Predicated region
    $region54: #{tpu_custom_call.1} parent=1 // pred_check
      _
    $region55: #{tpu_custom_call.1} parent=1 // pred_check_branch
      %93 = sbr.rel (0) target = $region57
    $region56: #{tpu_custom_call.1} parent=1 // pred_region
      %94 = dma.done [#allocation6], 256
    $region57: #{tpu_custom_call.1} parent=1 // pred_fallthru
      _
    // Predicated region
    $region58: #{tpu_custom_call.1} parent=1 // pred_check
      _
    $region59: #{tpu_custom_call.1} parent=1 // pred_check_branch
      %96 = sbr.rel (0) target = $region61
    $region60: #{tpu_custom_call.1} parent=1 // pred_region
      %97 = dma.done [#allocation6], 16
    $region61: #{tpu_custom_call.1} parent=1 // pred_fallthru
      _
    // Predicated region
    $region62: #{tpu_custom_call.1} parent=1 // pred_check
      _
    $region63: #{tpu_custom_call.1} parent=1 // pred_check_branch
      %99 = sbr.rel (0) target = $region65
    $region64: #{tpu_custom_call.1} parent=1 // pred_region
      %100 = dma.done [#allocation9], 16
    $region65: #{tpu_custom_call.1} parent=1 // pred_fallthru
      _
    // Predicated region
    $region66: #{tpu_custom_call.1} parent=1 // pred_check
      _
    $region67: #{tpu_custom_call.1} parent=1 // pred_check_branch
      %102 = sbr.rel (0) target = $region69
    $region68: #{tpu_custom_call.1} parent=1 // pred_region
      %103 = dma.done [#allocation9], 16
    $region69: #{tpu_custom_call.1} parent=1 // pred_fallthru
      _
    %v105 = vld [vmem:[%s0] sm:$0xf]
    %v106 = vld [vmem:[%s0 + $0x4] sm:$0xf]
    %s107 = scalar_lea.vmem %s0, 8
    %v108 = vld [vmem:[%s107] sm:$0xf]
    %v109 = vld [vmem:[%s107 + $0x4] sm:$0xf]
    %s110 = scalar_lea.vmem %s0, 16
    %v111 = vld [vmem:[%s110] sm:$0xf]
    %v112 = vld [vmem:[%s110 + $0x4] sm:$0xf]
    %s113 = scalar_lea.vmem %s0, 24
    %v114 = vld [vmem:[%s113] sm:$0xf]
    %v115 = vld [vmem:[%s113 + $0x4] sm:$0xf]
    %v116 = vadd.bf16 %v105, %v108
    %v117 = vadd.bf16 %v106, %v109
    %v118 = vadd.bf16 %v116, %v111
    %v119 = vadd.bf16 %v117, %v112
    %v120 = vadd.bf16 %v118, %v114
    %v121 = vadd.bf16 %v119, %v115
    %v124 = vunpack.c.l.b16 %v105
    %v125 = vunpack.c.l.b16 %v106
    %v126 = vpack.c.b16 %v125, %v124
    %v129 = vunpack.c.l.b16 %v108
    %v130 = vunpack.c.l.b16 %v109
    %v131 = vpack.c.b16 %v130, %v129
    %v134 = vunpack.c.l.b16 %v111
    %v135 = vunpack.c.l.b16 %v112
    %v136 = vpack.c.b16 %v135, %v134
    %v139 = vunpack.c.l.b16 %v114
    %v140 = vunpack.c.l.b16 %v115
    %v141 = vpack.c.b16 %v140, %v139
    %v144 = vunpack.c.l.b16 %v120
    %v145 = vunpack.c.l.b16 %v121
    %v146 = vpack.c.b16 %v145, %v144
    %147 = vrot.lane.b32.xlu0 %v146, 32
    %v148 = vpop.permute.xlu0 %147
    %vm149 = vcmask 261120
    %v152 = vsel %vm149, %v126, %v148
    %v154 = vsel %vm149, %v131, %v148
    %v156 = vsel %vm149, %v136, %v148
    %v158 = vsel %vm149, %v141, %v148
    %v159 = vld [vmem:[#allocation2] sm:$0xf]
    %v160 = vld [vmem:[#allocation2 + $0x4] sm:$0xf]
    %v161 = vld [vmem:[#allocation2 + $0x8] sm:$0xf]
    %v162 = vld [vmem:[#allocation2 + $0xc] sm:$0xf]
    %v163 = vld [vmem:[#allocation2 + $0x10] sm:$0xf]
    %v164 = vld [vmem:[#allocation2 + $0x14] sm:$0xf]
    %v165 = vld [vmem:[#allocation2 + $0x18] sm:$0xf]
    %v166 = vld [vmem:[#allocation2 + $0x1c] sm:$0xf]
    %v167 = vld [vmem:[%s2] sm:$0x1]
    %v169 = vlaneseq
    %v170 = vshrl.u32 %v169, 7
    %v171 = vsub.s32 0, %v170
    %v172 = vrot.slane %v167, %v171
    %v182 = vunpack.c.l.b16 %v159
    %v183 = vunpack.c.l.b16 %v160
    %v184 = vunpack.c.l.b16 %v161
    %v185 = vunpack.c.l.b16 %v162
    %v186 = vunpack.c.l.b16 %v163
    %v187 = vunpack.c.l.b16 %v164
    %v188 = vunpack.c.l.b16 %v165
    %v189 = vunpack.c.l.b16 %v166
    %v190 = vpack.c.b16 %v183, %v182
    %v191 = vpack.c.b16 %v185, %v184
    %v192 = vpack.c.b16 %v187, %v186
    %v193 = vpack.c.b16 %v189, %v188
    %vm198 = vcmask 523264
    %v199 = vsel %vm198, %v152, 0
    %v201 = vsel %vm198, %v154, 0
    %v203 = vsel %vm198, %v156, 0
    %v205 = vsel %vm198, %v158, 0
    %207 = vmatprep.subr.bf16.mxu0 0
    %208 = vmatpush1.bf16.msra.mxu0 %v190
    %209 = vmatprep.subr.bf16.mxu0 0
    %210 = vmatpush1.bf16.msra.mxu0 %v191
    %211 = vmatprep.subr.bf16.mxu0 0
    %212 = vmatpush1.bf16.msra.mxu0 %v192
    %213 = vmatprep.subr.bf16.mxu0 0
    %214 = vmatpush1.bf16.msra.mxu0 %v193
    %215 = vmatprep.subr.bf16.mxu0 0
    %216 = vmatpush1.bf16.msra.mxu0 0
    %217 = vmatprep.subr.bf16.mxu0 0
    %218 = vmatpush1.bf16.msra.mxu0 0
    %219 = vmatprep.subr.bf16.mxu0 0
    %220 = vmatpush1.bf16.msra.mxu0 0
    %221 = vmatprep.subr.bf16.mxu0 0
    %222 = vmatpush1.bf16.msra.mxu0 0
    %223 = vmatprep.subr.bf16.mxu0 0
    %224 = vmatpush1.bf16.msra.mxu0 0
    %225 = vmatprep.subr.bf16.mxu0 0
    %226 = vmatpush1.bf16.msra.mxu0 0
    %227 = vmatprep.subr.bf16.mxu0 0
    %228 = vmatpush1.bf16.msra.mxu0 0
    %229 = vmatprep.subr.bf16.mxu0 0
    %230 = vmatpush1.bf16.msra.mxu0 0
    %231 = vmatprep.subr.bf16.mxu0 0
    %232 = vmatpush1.bf16.msra.mxu0 0
    %233 = vmatprep.subr.bf16.mxu0 0
    %234 = vmatpush1.bf16.msra.mxu0 0
    %235 = vmatprep.subr.bf16.mxu0 0
    %236 = vmatpush1.bf16.msra.mxu0 0
    %237 = vmatprep.subr.bf16.mxu0 0
    %238 = vmatpush1.bf16.msra.mxu0 0
    %239 = vmatprep.mubr.bf16.mxu0 0
    %240 = vmatmul.mubr.bf16.gmra.mrb[0].mxu0 %v199
    %v241 = vpop.f32.mrb[0].mxu0
    %v242 = vadd.f32 %v172, %v241
    %v243 = vpop.f32.mrb[0].mxu0
    %v244 = vpop.f32.mrb[0].mxu0
    %v245 = vadd.f32 %v172, %v244
    %v246 = vpop.f32.mrb[0].mxu0
    %247 = vmatprep.mubr.bf16.mxu0 0
    %248 = vmatmul.mubr.bf16.gmra.mrb[0].mxu0 %v201
    %v249 = vpop.f32.mrb[0].mxu0
    %v250 = vadd.f32 %v172, %v249
    %v251 = vpop.f32.mrb[0].mxu0
    %v252 = vpop.f32.mrb[0].mxu0
    %v253 = vadd.f32 %v172, %v252
    %v254 = vpop.f32.mrb[0].mxu0
    %255 = vmatprep.mubr.bf16.mxu0 0
    %256 = vmatmul.mubr.bf16.gmra.mrb[0].mxu0 %v203
    %v257 = vpop.f32.mrb[0].mxu0
    %v258 = vadd.f32 %v172, %v257
    %v259 = vpop.f32.mrb[0].mxu0
    %v260 = vpop.f32.mrb[0].mxu0
    %v261 = vadd.f32 %v172, %v260
    %v262 = vpop.f32.mrb[0].mxu0
    %263 = vmatprep.mubr.bf16.mxu0 0
    %264 = vmatmul.mubr.bf16.gmra.mrb[0].mxu0 %v205
    %v265 = vpop.f32.mrb[0].mxu0
    %v266 = vadd.f32 %v172, %v265
    %v267 = vpop.f32.mrb[0].mxu0
    %v268 = vpop.f32.mrb[0].mxu0
    %v269 = vadd.f32 %v172, %v268
    %v270 = vpop.f32.mrb[0].mxu0
    %271 = vdwg.mxu0
    %v272 = vmax.f32 %v242, 0.0
    %v273 = vmax.f32 %v245, 0.0
    %v274 = vmax.f32 %v250, 0.0
    %v275 = vmax.f32 %v253, 0.0
    %v276 = vmax.f32 %v258, 0.0
    %v277 = vmax.f32 %v261, 0.0
    %v278 = vmax.f32 %v266, 0.0
    %v279 = vmax.f32 %v269, 0.0
    %v280 = vsel %vm198, %v272, 0.0
    %281 = vadd.xlane.f32.xlu0 %v280
    %v282 = vpop.xlane.xlu0 %281
    %v283 = vsel %vm198, %v273, 0.0
    %284 = vadd.xlane.f32.xlu0 %v283
    %v285 = vpop.xlane.xlu0 %284
    %v286 = vsel %vm198, %v274, 0.0
    %287 = vadd.xlane.f32.xlu0 %v286
    %v288 = vpop.xlane.xlu0 %287
    %v289 = vsel %vm198, %v275, 0.0
    %290 = vadd.xlane.f32.xlu0 %v289
    %v291 = vpop.xlane.xlu0 %290
    %v292 = vsel %vm198, %v276, 0.0
    %293 = vadd.xlane.f32.xlu0 %v292
    %v294 = vpop.xlane.xlu0 %293
    %v295 = vsel %vm198, %v277, 0.0
    %296 = vadd.xlane.f32.xlu0 %v295
    %v297 = vpop.xlane.xlu0 %296
    %v298 = vsel %vm198, %v278, 0.0
    %299 = vadd.xlane.f32.xlu0 %v298
    %v300 = vpop.xlane.xlu0 %299
    %v301 = vsel %vm198, %v279, 0.0
    %302 = vadd.xlane.f32.xlu0 %v301
    %v303 = vpop.xlane.xlu0 %302
    %v304 = vrcp.pop 64.0
    %v305 = vmul.f32 %v282, %v304
    %v306 = vmul.f32 %v285, %v304
    %v307 = vmul.f32 %v288, %v304
    %v308 = vmul.f32 %v291, %v304
    %v309 = vmul.f32 %v294, %v304
    %v310 = vmul.f32 %v297, %v304
    %v311 = vmul.f32 %v300, %v304
    %v312 = vmul.f32 %v303, %v304
    %v313 = vsub.f32 %v272, %v305
    %v314 = vsub.f32 %v273, %v306
    %v315 = vsub.f32 %v274, %v307
    %v316 = vsub.f32 %v275, %v308
    %v317 = vsub.f32 %v276, %v309
    %v318 = vsub.f32 %v277, %v310
    %v319 = vsub.f32 %v278, %v311
    %v320 = vsub.f32 %v279, %v312
    %v321 = vmul.f32 %v313, %v313
    %v322 = vmul.f32 %v314, %v314
    %v323 = vmul.f32 %v315, %v315
    %v324 = vmul.f32 %v316, %v316
    %v325 = vmul.f32 %v317, %v317
    %v326 = vmul.f32 %v318, %v318
    %v327 = vmul.f32 %v319, %v319
    %v328 = vmul.f32 %v320, %v320
    %v329 = vsel %vm198, %v321, 0.0
    %330 = vadd.xlane.f32.xlu0 %v329
    %v331 = vpop.xlane.xlu0 %330
    %v332 = vsel %vm198, %v322, 0.0
    %333 = vadd.xlane.f32.xlu0 %v332
    %v334 = vpop.xlane.xlu0 %333
    %v335 = vsel %vm198, %v323, 0.0
    %336 = vadd.xlane.f32.xlu0 %v335
    %v337 = vpop.xlane.xlu0 %336
    %v338 = vsel %vm198, %v324, 0.0
    %339 = vadd.xlane.f32.xlu0 %v338
    %v340 = vpop.xlane.xlu0 %339
    %v341 = vsel %vm198, %v325, 0.0
    %342 = vadd.xlane.f32.xlu0 %v341
    %v343 = vpop.xlane.xlu0 %342
    %v344 = vsel %vm198, %v326, 0.0
    %345 = vadd.xlane.f32.xlu0 %v344
    %v346 = vpop.xlane.xlu0 %345
    %v347 = vsel %vm198, %v327, 0.0
    %348 = vadd.xlane.f32.xlu0 %v347
    %v349 = vpop.xlane.xlu0 %348
    %v350 = vsel %vm198, %v328, 0.0
    %351 = vadd.xlane.f32.xlu0 %v350
    %v352 = vpop.xlane.xlu0 %351
    %v353 = vmul.f32 %v331, %v304
    %v354 = vmul.f32 %v334, %v304
    %v355 = vmul.f32 %v337, %v304
    %v356 = vmul.f32 %v340, %v304
    %v357 = vmul.f32 %v343, %v304
    %v358 = vmul.f32 %v346, %v304
    %v359 = vmul.f32 %v349, %v304
    %v360 = vmul.f32 %v352, %v304
    %v361 = vadd.f32 %v353, 1e-05
    %v362 = vadd.f32 %v354, 1e-05
    %v363 = vadd.f32 %v355, 1e-05
    %v364 = vadd.f32 %v356, 1e-05
    %v365 = vadd.f32 %v357, 1e-05
    %v366 = vadd.f32 %v358, 1e-05
    %v367 = vadd.f32 %v359, 1e-05
    %v368 = vadd.f32 %v360, 1e-05
    %v369 = vrsqrt.pop %v361
    %v370 = vrsqrt.pop %v362
    %v371 = vrsqrt.pop %v363
    %v372 = vrsqrt.pop %v364
    %v373 = vrsqrt.pop %v365
    %v374 = vrsqrt.pop %v366
    %v375 = vrsqrt.pop %v367
    %v376 = vrsqrt.pop %v368
    %v377 = vmul.f32 %v313, %v369
    %v378 = vmul.f32 %v314, %v370
    %v379 = vmul.f32 %v315, %v371
    %v380 = vmul.f32 %v316, %v372
    %v381 = vmul.f32 %v317, %v373
    %v382 = vmul.f32 %v318, %v374
    %v383 = vmul.f32 %v319, %v375
    %v384 = vmul.f32 %v320, %v376
    %v385 = vpack.c.bf16 %v378, %v377
    %v386 = vpack.c.bf16 %v380, %v379
    %v387 = vpack.c.bf16 %v382, %v381
    %v388 = vpack.c.bf16 %v384, %v383
    %v389 = vadd.bf16 %v385, %v386
    %v390 = vadd.bf16 %v389, %v387
    %v391 = vadd.bf16 %v390, %v388
    %393 = vrot.lane.b32.xlu0 %v391, 64
    %v394 = vpop.permute.xlu0 %393
    %v397 = vsel %vm198, %v385, %v394
    %v400 = vsel %vm198, %v386, %v394
    %v403 = vsel %vm198, %v387, %v394
    %v406 = vsel %vm198, %v388, %v394
    %v408 = vld [vmem:[%s3] sm:$0xf]
    %v409 = vld [vmem:[%s3 + $0x4] sm:$0xf]
    %v410 = vld [vmem:[%s3 + $0x8] sm:$0xf]
    %v411 = vld [vmem:[%s3 + $0xc] sm:$0xf]
    %v412 = vld [vmem:[%s3 + $0x10] sm:$0xf]
    %v413 = vld [vmem:[%s3 + $0x14] sm:$0xf]
    %v414 = vld [vmem:[%s3 + $0x18] sm:$0xf]
    %v415 = vld [vmem:[%s3 + $0x1c] sm:$0xf]
    %v416 = vld [vmem:[%s3 + $0x20] sm:$0xf]
    %v417 = vld [vmem:[%s3 + $0x24] sm:$0xf]
    %v418 = vld [vmem:[%s3 + $0x28] sm:$0xf]
    %v419 = vld [vmem:[%s3 + $0x2c] sm:$0xf]
    %v420 = vld [vmem:[%s3 + $0x30] sm:$0xf]
    %v421 = vld [vmem:[%s3 + $0x34] sm:$0xf]
    %v422 = vld [vmem:[%s3 + $0x38] sm:$0xf]
    %v423 = vld [vmem:[%s3 + $0x3c] sm:$0xf]
    %v424 = vld [vmem:[%s4] sm:$0x1]
    %v426 = vlaneseq
    %v427 = vshrl.u32 %v426, 7
    %v428 = vsub.s32 0, %v427
    %v429 = vrot.slane %v424, %v428
    %v447 = vunpack.c.l.b16 %v408
    %v448 = vunpack.c.l.b16 %v409
    %v449 = vunpack.c.l.b16 %v410
    %v450 = vunpack.c.l.b16 %v411
    %v451 = vunpack.c.l.b16 %v412
    %v452 = vunpack.c.l.b16 %v413
    %v453 = vunpack.c.l.b16 %v414
    %v454 = vunpack.c.l.b16 %v415
    %v455 = vunpack.c.l.b16 %v416
    %v456 = vunpack.c.l.b16 %v417
    %v457 = vunpack.c.l.b16 %v418
    %v458 = vunpack.c.l.b16 %v419
    %v459 = vunpack.c.l.b16 %v420
    %v460 = vunpack.c.l.b16 %v421
    %v461 = vunpack.c.l.b16 %v422
    %v462 = vunpack.c.l.b16 %v423
    %v463 = vpack.c.b16 %v448, %v447
    %v464 = vpack.c.b16 %v450, %v449
    %v465 = vpack.c.b16 %v452, %v451
    %v466 = vpack.c.b16 %v454, %v453
    %v467 = vpack.c.b16 %v456, %v455
    %v468 = vpack.c.b16 %v458, %v457
    %v469 = vpack.c.b16 %v460, %v459
    %v470 = vpack.c.b16 %v462, %v461
    %479 = vmatprep.subr.bf16.mxu0 0
    %480 = vmatpush1.bf16.msra.mxu0 %v463
    %481 = vmatprep.subr.bf16.mxu0 0
    %482 = vmatpush1.bf16.msra.mxu0 %v464
    %483 = vmatprep.subr.bf16.mxu0 0
    %484 = vmatpush1.bf16.msra.mxu0 %v465
    %485 = vmatprep.subr.bf16.mxu0 0
    %486 = vmatpush1.bf16.msra.mxu0 %v466
    %487 = vmatprep.subr.bf16.mxu0 0
    %488 = vmatpush1.bf16.msra.mxu0 %v467
    %489 = vmatprep.subr.bf16.mxu0 0
    %490 = vmatpush1.bf16.msra.mxu0 %v468
    %491 = vmatprep.subr.bf16.mxu0 0
    %492 = vmatpush1.bf16.msra.mxu0 %v469
    %493 = vmatprep.subr.bf16.mxu0 0
    %494 = vmatpush1.bf16.msra.mxu0 %v470
    %495 = vmatprep.subr.bf16.mxu0 0
    %496 = vmatpush1.bf16.msra.mxu0 0
    %497 = vmatprep.subr.bf16.mxu0 0
    %498 = vmatpush1.bf16.msra.mxu0 0
    %499 = vmatprep.subr.bf16.mxu0 0
    %500 = vmatpush1.bf16.msra.mxu0 0
    %501 = vmatprep.subr.bf16.mxu0 0
    %502 = vmatpush1.bf16.msra.mxu0 0
    %503 = vmatprep.subr.bf16.mxu0 0
    %504 = vmatpush1.bf16.msra.mxu0 0
    %505 = vmatprep.subr.bf16.mxu0 0
    %506 = vmatpush1.bf16.msra.mxu0 0
    %507 = vmatprep.subr.bf16.mxu0 0
    %508 = vmatpush1.bf16.msra.mxu0 0
    %509 = vmatprep.subr.bf16.mxu0 0
    %510 = vmatpush1.bf16.msra.mxu0 0
    %511 = vmatprep.mubr.bf16.mxu0 0
    %512 = vmatmul.mubr.bf16.gmra.mrb[0].mxu0 %v397
    %v513 = vpop.f32.mrb[0].mxu0
    %v514 = vadd.f32 %v429, %v513
    %v515 = vpop.f32.mrb[0].mxu0
    %v516 = vpop.f32.mrb[0].mxu0
    %v517 = vadd.f32 %v429, %v516
    %v518 = vpop.f32.mrb[0].mxu0
    %519 = vmatprep.mubr.bf16.mxu0 0
    %520 = vmatmul.mubr.bf16.gmra.mrb[0].mxu0 %v400
    %v521 = vpop.f32.mrb[0].mxu0
    %v522 = vadd.f32 %v429, %v521
    %v523 = vpop.f32.mrb[0].mxu0
    %v524 = vpop.f32.mrb[0].mxu0
    %v525 = vadd.f32 %v429, %v524
    %v526 = vpop.f32.mrb[0].mxu0
    %527 = vmatprep.mubr.bf16.mxu0 0
    %528 = vmatmul.mubr.bf16.gmra.mrb[0].mxu0 %v403
    %v529 = vpop.f32.mrb[0].mxu0
    %v530 = vadd.f32 %v429, %v529
    %v531 = vpop.f32.mrb[0].mxu0
    %v532 = vpop.f32.mrb[0].mxu0
    %v533 = vadd.f32 %v429, %v532
    %v534 = vpop.f32.mrb[0].mxu0
    %535 = vmatprep.mubr.bf16.mxu0 0
    %536 = vmatmul.mubr.bf16.gmra.mrb[0].mxu0 %v406
    %v537 = vpop.f32.mrb[0].mxu0
    %v538 = vadd.f32 %v429, %v537
    %v539 = vpop.f32.mrb[0].mxu0
    %v540 = vpop.f32.mrb[0].mxu0
    %v541 = vadd.f32 %v429, %v540
    %v542 = vpop.f32.mrb[0].mxu0
    %543 = vdwg.mxu0
    %v544 = vmax.f32 %v514, 0.0
    %v545 = vmax.f32 %v517, 0.0
    %v546 = vmax.f32 %v522, 0.0
    %v547 = vmax.f32 %v525, 0.0
    %v548 = vmax.f32 %v530, 0.0
    %v549 = vmax.f32 %v533, 0.0
    %v550 = vmax.f32 %v538, 0.0
    %v551 = vmax.f32 %v541, 0.0
    %v552 = vsel %vm198, %v544, 0.0
    %553 = vadd.xlane.f32.xlu0 %v552
    %v554 = vpop.xlane.xlu0 %553
    %v555 = vsel %vm198, %v545, 0.0
    %556 = vadd.xlane.f32.xlu0 %v555
    %v557 = vpop.xlane.xlu0 %556
    %v558 = vsel %vm198, %v546, 0.0
    %559 = vadd.xlane.f32.xlu0 %v558
    %v560 = vpop.xlane.xlu0 %559
    %v561 = vsel %vm198, %v547, 0.0
    %562 = vadd.xlane.f32.xlu0 %v561
    %v563 = vpop.xlane.xlu0 %562
    %v564 = vsel %vm198, %v548, 0.0
    %565 = vadd.xlane.f32.xlu0 %v564
    %v566 = vpop.xlane.xlu0 %565
    %v567 = vsel %vm198, %v549, 0.0
    %568 = vadd.xlane.f32.xlu0 %v567
    %v569 = vpop.xlane.xlu0 %568
    %v570 = vsel %vm198, %v550, 0.0
    %571 = vadd.xlane.f32.xlu0 %v570
    %v572 = vpop.xlane.xlu0 %571
    %v573 = vsel %vm198, %v551, 0.0
    %574 = vadd.xlane.f32.xlu0 %v573
    %v575 = vpop.xlane.xlu0 %574
    %v576 = vmul.f32 %v554, %v304
    %v577 = vmul.f32 %v557, %v304
    %v578 = vmul.f32 %v560, %v304
    %v579 = vmul.f32 %v563, %v304
    %v580 = vmul.f32 %v566, %v304
    %v581 = vmul.f32 %v569, %v304
    %v582 = vmul.f32 %v572, %v304
    %v583 = vmul.f32 %v575, %v304
    %v584 = vsub.f32 %v544, %v576
    %v585 = vsub.f32 %v545, %v577
    %v586 = vsub.f32 %v546, %v578
    %v587 = vsub.f32 %v547, %v579
    %v588 = vsub.f32 %v548, %v580
    %v589 = vsub.f32 %v549, %v581
    %v590 = vsub.f32 %v550, %v582
    %v591 = vsub.f32 %v551, %v583
    %v592 = vmul.f32 %v584, %v584
    %v593 = vmul.f32 %v585, %v585
    %v594 = vmul.f32 %v586, %v586
    %v595 = vmul.f32 %v587, %v587
    %v596 = vmul.f32 %v588, %v588
    %v597 = vmul.f32 %v589, %v589
    %v598 = vmul.f32 %v590, %v590
    %v599 = vmul.f32 %v591, %v591
    %v600 = vsel %vm198, %v592, 0.0
    %601 = vadd.xlane.f32.xlu0 %v600
    %v602 = vpop.xlane.xlu0 %601
    %v603 = vsel %vm198, %v593, 0.0
    %604 = vadd.xlane.f32.xlu0 %v603
    %v605 = vpop.xlane.xlu0 %604
    %v606 = vsel %vm198, %v594, 0.0
    %607 = vadd.xlane.f32.xlu0 %v606
    %v608 = vpop.xlane.xlu0 %607
    %v609 = vsel %vm198, %v595, 0.0
    %610 = vadd.xlane.f32.xlu0 %v609
    %v611 = vpop.xlane.xlu0 %610
    %v612 = vsel %vm198, %v596, 0.0
    %613 = vadd.xlane.f32.xlu0 %v612
    %v614 = vpop.xlane.xlu0 %613
    %v615 = vsel %vm198, %v597, 0.0
    %616 = vadd.xlane.f32.xlu0 %v615
    %v617 = vpop.xlane.xlu0 %616
    %v618 = vsel %vm198, %v598, 0.0
    %619 = vadd.xlane.f32.xlu0 %v618
    %v620 = vpop.xlane.xlu0 %619
    %v621 = vsel %vm198, %v599, 0.0
    %622 = vadd.xlane.f32.xlu0 %v621
    %v623 = vpop.xlane.xlu0 %622
    %v624 = vmul.f32 %v602, %v304
    %v625 = vmul.f32 %v605, %v304
    %v626 = vmul.f32 %v608, %v304
    %v627 = vmul.f32 %v611, %v304
    %v628 = vmul.f32 %v614, %v304
    %v629 = vmul.f32 %v617, %v304
    %v630 = vmul.f32 %v620, %v304
    %v631 = vmul.f32 %v623, %v304
    %v632 = vadd.f32 %v624, 1e-05
    %v633 = vadd.f32 %v625, 1e-05
    %v634 = vadd.f32 %v626, 1e-05
    %v635 = vadd.f32 %v627, 1e-05
    %v636 = vadd.f32 %v628, 1e-05
    %v637 = vadd.f32 %v629, 1e-05
    %v638 = vadd.f32 %v630, 1e-05
    %v639 = vadd.f32 %v631, 1e-05
    %v640 = vrsqrt.pop %v632
    %v641 = vrsqrt.pop %v633
    %v642 = vrsqrt.pop %v634
    %v643 = vrsqrt.pop %v635
    %v644 = vrsqrt.pop %v636
    %v645 = vrsqrt.pop %v637
    %v646 = vrsqrt.pop %v638
    %v647 = vrsqrt.pop %v639
    %v648 = vmul.f32 %v584, %v640
    %v649 = vmul.f32 %v585, %v641
    %v650 = vmul.f32 %v586, %v642
    %v651 = vmul.f32 %v587, %v643
    %v652 = vmul.f32 %v588, %v644
    %v653 = vmul.f32 %v589, %v645
    %v654 = vmul.f32 %v590, %v646
    %v655 = vmul.f32 %v591, %v647
    %v656 = vadd.f32 %v648, %v650
    %v657 = vadd.f32 %v649, %v651
    %v658 = vadd.f32 %v656, %v652
    %v659 = vadd.f32 %v657, %v653
    %v660 = vadd.f32 %v658, %v654
    %v661 = vadd.f32 %v659, %v655
    %v662 = vmul.f32 %v660, 0.25
    %v663 = vmul.f32 %v661, 0.25
    %v664 = vpack.c.bf16 %v663, %v662
    %v665 = vld [vmem:[%s10] sm:$0xf]
    %v666 = vld [vmem:[%s10 + $0x4] sm:$0xf]
    %v667 = vld [vmem:[%s10 + $0x8] sm:$0xf]
    %v668 = vld [vmem:[%s10 + $0xc] sm:$0xf]
    %v669 = vld [vmem:[%s10 + $0x10] sm:$0xf]
    %v670 = vld [vmem:[%s10 + $0x14] sm:$0xf]
    %v671 = vld [vmem:[%s10 + $0x18] sm:$0xf]
    %v672 = vld [vmem:[%s10 + $0x1c] sm:$0xf]
    %v673 = vld [vmem:[#allocation5] sm:$0xf]
    %v674 = vld [vmem:[#allocation5 + $0x4] sm:$0xf]
    %v675 = vld [vmem:[#allocation5 + $0x8] sm:$0xf]
    %v676 = vld [vmem:[#allocation5 + $0xc] sm:$0xf]
    %v677 = vld [vmem:[#allocation7] sm:$0x1]
    %v679 = vlaneseq
    %v680 = vshrl.u32 %v679, 7
    %v681 = vsub.s32 0, %v680
    %v682 = vrot.slane %v677, %v681
    %v688 = vunpack.c.l.b16 %v673
    %v689 = vunpack.c.l.b16 %v674
    %v690 = vunpack.c.l.b16 %v675
    %v691 = vunpack.c.l.b16 %v676
    %v692 = vpack.c.b16 %v689, %v688
    %v693 = vpack.c.b16 %v691, %v690
    %v696 = vsel %vm149, %v126, 0
    %v698 = vsel %vm149, %v131, 0
    %v700 = vsel %vm149, %v136, 0
    %v702 = vsel %vm149, %v141, 0
    %704 = vmatprep.subr.bf16.mxu0 0
    %705 = vmatpush1.bf16.msra.mxu0 %v692
    %706 = vmatprep.subr.bf16.mxu0 0
    %707 = vmatpush1.bf16.msra.mxu0 %v693
    %708 = vmatprep.subr.bf16.mxu0 0
    %709 = vmatpush1.bf16.msra.mxu0 0
    %710 = vmatprep.subr.bf16.mxu0 0
    %711 = vmatpush1.bf16.msra.mxu0 0
    %712 = vmatprep.subr.bf16.mxu0 0
    %713 = vmatpush1.bf16.msra.mxu0 0
    %714 = vmatprep.subr.bf16.mxu0 0
    %715 = vmatpush1.bf16.msra.mxu0 0
    %716 = vmatprep.subr.bf16.mxu0 0
    %717 = vmatpush1.bf16.msra.mxu0 0
    %718 = vmatprep.subr.bf16.mxu0 0
    %719 = vmatpush1.bf16.msra.mxu0 0
    %720 = vmatprep.subr.bf16.mxu0 0
    %721 = vmatpush1.bf16.msra.mxu0 0
    %722 = vmatprep.subr.bf16.mxu0 0
    %723 = vmatpush1.bf16.msra.mxu0 0
    %724 = vmatprep.subr.bf16.mxu0 0
    %725 = vmatpush1.bf16.msra.mxu0 0
    %726 = vmatprep.subr.bf16.mxu0 0
    %727 = vmatpush1.bf16.msra.mxu0 0
    %728 = vmatprep.subr.bf16.mxu0 0
    %729 = vmatpush1.bf16.msra.mxu0 0
    %730 = vmatprep.subr.bf16.mxu0 0
    %731 = vmatpush1.bf16.msra.mxu0 0
    %732 = vmatprep.subr.bf16.mxu0 0
    %733 = vmatpush1.bf16.msra.mxu0 0
    %734 = vmatprep.subr.bf16.mxu0 0
    %735 = vmatpush1.bf16.msra.mxu0 0
    %736 = vmatprep.mubr.bf16.mxu0 0
    %737 = vmatmul.mubr.bf16.gmra.mrb[0].mxu0 %v696
    %v738 = vpop.f32.mrb[0].mxu0
    %v739 = vadd.f32 %v682, %v738
    %v740 = vpop.f32.mrb[0].mxu0
    %v741 = vpop.f32.mrb[0].mxu0
    %v742 = vadd.f32 %v682, %v741
    %v743 = vpop.f32.mrb[0].mxu0
    %744 = vmatprep.mubr.bf16.mxu0 0
    %745 = vmatmul.mubr.bf16.gmra.mrb[0].mxu0 %v698
    %v746 = vpop.f32.mrb[0].mxu0
    %v747 = vadd.f32 %v682, %v746
    %v748 = vpop.f32.mrb[0].mxu0
    %v749 = vpop.f32.mrb[0].mxu0
    %v750 = vadd.f32 %v682, %v749
    %v751 = vpop.f32.mrb[0].mxu0
    %752 = vmatprep.mubr.bf16.mxu0 0
    %753 = vmatmul.mubr.bf16.gmra.mrb[0].mxu0 %v700
    %v754 = vpop.f32.mrb[0].mxu0
    %v755 = vadd.f32 %v682, %v754
    %v756 = vpop.f32.mrb[0].mxu0
    %v757 = vpop.f32.mrb[0].mxu0
    %v758 = vadd.f32 %v682, %v757
    %v759 = vpop.f32.mrb[0].mxu0
    %760 = vmatprep.mubr.bf16.mxu0 0
    %761 = vmatmul.mubr.bf16.gmra.mrb[0].mxu0 %v702
    %v762 = vpop.f32.mrb[0].mxu0
    %v763 = vadd.f32 %v682, %v762
    %v764 = vpop.f32.mrb[0].mxu0
    %v765 = vpop.f32.mrb[0].mxu0
    %v766 = vadd.f32 %v682, %v765
    %v767 = vpop.f32.mrb[0].mxu0
    %768 = vdwg.mxu0
    %v769 = vld [vmem:[#allocation8] sm:$0x1]
    %v770 = vld [vmem:[#allocation10] sm:$0x1]
    %v771 = vsel %vm149, %v739, 0.0
    %772 = vadd.xlane.f32.xlu0 %v771
    %v773 = vpop.xlane.xlu0 %772
    %v774 = vsel %vm149, %v742, 0.0
    %775 = vadd.xlane.f32.xlu0 %v774
    %v776 = vpop.xlane.xlu0 %775
    %v777 = vsel %vm149, %v747, 0.0
    %778 = vadd.xlane.f32.xlu0 %v777
    %v779 = vpop.xlane.xlu0 %778
    %v780 = vsel %vm149, %v750, 0.0
    %781 = vadd.xlane.f32.xlu0 %v780
    %v782 = vpop.xlane.xlu0 %781
    %v783 = vsel %vm149, %v755, 0.0
    %784 = vadd.xlane.f32.xlu0 %v783
    %v785 = vpop.xlane.xlu0 %784
    %v786 = vsel %vm149, %v758, 0.0
    %787 = vadd.xlane.f32.xlu0 %v786
    %v788 = vpop.xlane.xlu0 %787
    %v789 = vsel %vm149, %v763, 0.0
    %790 = vadd.xlane.f32.xlu0 %v789
    %v791 = vpop.xlane.xlu0 %790
    %v792 = vsel %vm149, %v766, 0.0
    %793 = vadd.xlane.f32.xlu0 %v792
    %v794 = vpop.xlane.xlu0 %793
    %v795 = vrcp.pop 32.0
    %v796 = vmul.f32 %v773, %v795
    %v797 = vmul.f32 %v776, %v795
    %v798 = vmul.f32 %v779, %v795
    %v799 = vmul.f32 %v782, %v795
    %v800 = vmul.f32 %v785, %v795
    %v801 = vmul.f32 %v788, %v795
    %v802 = vmul.f32 %v791, %v795
    %v803 = vmul.f32 %v794, %v795
    %v804 = vsub.f32 %v739, %v796
    %v805 = vsub.f32 %v742, %v797
    %v806 = vsub.f32 %v747, %v798
    %v807 = vsub.f32 %v750, %v799
    %v808 = vsub.f32 %v755, %v800
    %v809 = vsub.f32 %v758, %v801
    %v810 = vsub.f32 %v763, %v802
    %v811 = vsub.f32 %v766, %v803
    %v812 = vmul.f32 %v804, %v804
    %v813 = vmul.f32 %v805, %v805
    %v814 = vmul.f32 %v806, %v806
    %v815 = vmul.f32 %v807, %v807
    %v816 = vmul.f32 %v808, %v808
    %v817 = vmul.f32 %v809, %v809
    %v818 = vmul.f32 %v810, %v810
    %v819 = vmul.f32 %v811, %v811
    %v820 = vsel %vm149, %v812, 0.0
    %821 = vadd.xlane.f32.xlu0 %v820
    %v822 = vpop.xlane.xlu0 %821
    %v823 = vsel %vm149, %v813, 0.0
    %824 = vadd.xlane.f32.xlu0 %v823
    %v825 = vpop.xlane.xlu0 %824
    %v826 = vsel %vm149, %v814, 0.0
    %827 = vadd.xlane.f32.xlu0 %v826
    %v828 = vpop.xlane.xlu0 %827
    %v829 = vsel %vm149, %v815, 0.0
    %830 = vadd.xlane.f32.xlu0 %v829
    %v831 = vpop.xlane.xlu0 %830
    %v832 = vsel %vm149, %v816, 0.0
    %833 = vadd.xlane.f32.xlu0 %v832
    %v834 = vpop.xlane.xlu0 %833
    %v835 = vsel %vm149, %v817, 0.0
    %836 = vadd.xlane.f32.xlu0 %v835
    %v837 = vpop.xlane.xlu0 %836
    %v838 = vsel %vm149, %v818, 0.0
    %839 = vadd.xlane.f32.xlu0 %v838
    %v840 = vpop.xlane.xlu0 %839
    %v841 = vsel %vm149, %v819, 0.0
    %842 = vadd.xlane.f32.xlu0 %v841
    %v843 = vpop.xlane.xlu0 %842
    %v844 = vmul.f32 %v822, %v795
    %v845 = vmul.f32 %v825, %v795
    %v846 = vmul.f32 %v828, %v795
    %v847 = vmul.f32 %v831, %v795
    %v848 = vmul.f32 %v834, %v795
    %v849 = vmul.f32 %v837, %v795
    %v850 = vmul.f32 %v840, %v795
    %v851 = vmul.f32 %v843, %v795
    %v852 = vadd.f32 %v844, 1e-05
    %v853 = vadd.f32 %v845, 1e-05
    %v854 = vadd.f32 %v846, 1e-05
    %v855 = vadd.f32 %v847, 1e-05
    %v856 = vadd.f32 %v848, 1e-05
    %v857 = vadd.f32 %v849, 1e-05
    %v858 = vadd.f32 %v850, 1e-05
    %v859 = vadd.f32 %v851, 1e-05
    %v860 = vrsqrt.pop %v852
    %v861 = vrsqrt.pop %v853
    %v862 = vrsqrt.pop %v854
    %v863 = vrsqrt.pop %v855
    %v864 = vrsqrt.pop %v856
    %v865 = vrsqrt.pop %v857
    %v866 = vrsqrt.pop %v858
    %v867 = vrsqrt.pop %v859
    %v868 = vmul.f32 %v804, %v860
    %v869 = vmul.f32 %v805, %v861
    %v870 = vmul.f32 %v806, %v862
    %v871 = vmul.f32 %v807, %v863
    %v872 = vmul.f32 %v808, %v864
    %v873 = vmul.f32 %v809, %v865
    %v874 = vmul.f32 %v810, %v866
    %v875 = vmul.f32 %v811, %v867
    %v877 = vlaneseq
    %v878 = vshrl.u32 %v877, 7
    %v879 = vsub.s32 0, %v878
    %v880 = vrot.slane %v769, %v879
    %v882 = vmul.f32 %v868, %v880
    %v883 = vmul.f32 %v869, %v880
    %v884 = vmul.f32 %v870, %v880
    %v885 = vmul.f32 %v871, %v880
    %v886 = vmul.f32 %v872, %v880
    %v887 = vmul.f32 %v873, %v880
    %v888 = vmul.f32 %v874, %v880
    %v889 = vmul.f32 %v875, %v880
    %v891 = vlaneseq
    %v892 = vshrl.u32 %v891, 7
    %v893 = vsub.s32 0, %v892
    %v894 = vrot.slane %v770, %v893
    %v896 = vadd.f32 %v882, %v894
    %v897 = vadd.f32 %v883, %v894
    %v898 = vadd.f32 %v884, %v894
    %v899 = vadd.f32 %v885, %v894
    %v900 = vadd.f32 %v886, %v894
    %v901 = vadd.f32 %v887, %v894
    %v902 = vadd.f32 %v888, %v894
    %v903 = vadd.f32 %v889, %v894
    %v904 = vmax.f32 %v896, 0.0
    %v905 = vmax.f32 %v897, 0.0
    %v906 = vmax.f32 %v898, 0.0
    %v907 = vmax.f32 %v899, 0.0
    %v908 = vmax.f32 %v900, 0.0
    %v909 = vmax.f32 %v901, 0.0
    %v910 = vmax.f32 %v902, 0.0
    %v911 = vmax.f32 %v903, 0.0
    %v912 = vpack.c.bf16 %v905, %v904
    %v913 = vpack.c.bf16 %v907, %v906
    %v914 = vpack.c.bf16 %v909, %v908
    %v915 = vpack.c.bf16 %v911, %v910
    %917 = vrot.lane.b32.xlu0 %v913, 32
    %v918 = vpop.permute.xlu0 %917
    %920 = vrot.lane.b32.xlu0 %v914, 64
    %v921 = vpop.permute.xlu0 %920
    %923 = vrot.lane.b32.xlu0 %v915, 96
    %v924 = vpop.permute.xlu0 %923
    %v927 = vsel %vm149, %v912, %v918
    %v929 = vsel %vm198, %v927, %v921
    %vm930 = vcmask 785408
    %v932 = vsel %vm930, %v929, %v924
    %v934 = vld [vmem:[%s9] sm:$0xf]
    %v935 = vld [vmem:[%s9 + $0x4] sm:$0xf]
    %v936 = vld [vmem:[%s9 + $0x8] sm:$0xf]
    %v937 = vld [vmem:[%s9 + $0xc] sm:$0xf]
    %v938 = vld [vmem:[%s9 + $0x10] sm:$0xf]
    %v939 = vld [vmem:[%s9 + $0x14] sm:$0xf]
    %v940 = vld [vmem:[%s9 + $0x18] sm:$0xf]
    %v941 = vld [vmem:[%s9 + $0x1c] sm:$0xf]
    %v942 = vld [vmem:[%s9 + $0x20] sm:$0xf]
    %v943 = vld [vmem:[%s9 + $0x24] sm:$0xf]
    %v944 = vld [vmem:[%s9 + $0x28] sm:$0xf]
    %v945 = vld [vmem:[%s9 + $0x2c] sm:$0xf]
    %v946 = vld [vmem:[%s9 + $0x30] sm:$0xf]
    %v947 = vld [vmem:[%s9 + $0x34] sm:$0xf]
    %v948 = vld [vmem:[%s9 + $0x38] sm:$0xf]
    %v949 = vld [vmem:[%s9 + $0x3c] sm:$0xf]
    %v966 = vunpack.c.l.b16 %v934
    %v967 = vunpack.c.l.b16 %v935
    %v968 = vunpack.c.l.b16 %v936
    %v969 = vunpack.c.l.b16 %v937
    %v970 = vunpack.c.l.b16 %v938
    %v971 = vunpack.c.l.b16 %v939
    %v972 = vunpack.c.l.b16 %v940
    %v973 = vunpack.c.l.b16 %v941
    %v974 = vunpack.c.l.b16 %v942
    %v975 = vunpack.c.l.b16 %v943
    %v976 = vunpack.c.l.b16 %v944
    %v977 = vunpack.c.l.b16 %v945
    %v978 = vunpack.c.l.b16 %v946
    %v979 = vunpack.c.l.b16 %v947
    %v980 = vunpack.c.l.b16 %v948
    %v981 = vunpack.c.l.b16 %v949
    %v982 = vpack.c.b16 %v967, %v966
    %v983 = vpack.c.b16 %v969, %v968
    %v984 = vpack.c.b16 %v971, %v970
    %v985 = vpack.c.b16 %v973, %v972
    %v986 = vpack.c.b16 %v975, %v974
    %v987 = vpack.c.b16 %v977, %v976
    %v988 = vpack.c.b16 %v979, %v978
    %v989 = vpack.c.b16 %v981, %v980
    %998 = vmatprep.subr.bf16.mxu0 0
    %999 = vmatpush1.bf16.msra.mxu0 %v982
    %1000 = vmatprep.subr.bf16.mxu0 0
    %1001 = vmatpush1.bf16.msra.mxu0 %v983
    %1002 = vmatprep.subr.bf16.mxu0 0
    %1003 = vmatpush1.bf16.msra.mxu0 %v984
    %1004 = vmatprep.subr.bf16.mxu0 0
    %1005 = vmatpush1.bf16.msra.mxu0 %v985
    %1006 = vmatprep.subr.bf16.mxu0 0
    %1007 = vmatpush1.bf16.msra.mxu0 %v986
    %1008 = vmatprep.subr.bf16.mxu0 0
    %1009 = vmatpush1.bf16.msra.mxu0 %v987
    %1010 = vmatprep.subr.bf16.mxu0 0
    %1011 = vmatpush1.bf16.msra.mxu0 %v988
    %1012 = vmatprep.subr.bf16.mxu0 0
    %1013 = vmatpush1.bf16.msra.mxu0 %v989
    %1014 = vmatprep.subr.bf16.mxu0 0
    %1015 = vmatpush1.bf16.msra.mxu0 0
    %1016 = vmatprep.subr.bf16.mxu0 0
    %1017 = vmatpush1.bf16.msra.mxu0 0
    %1018 = vmatprep.subr.bf16.mxu0 0
    %1019 = vmatpush1.bf16.msra.mxu0 0
    %1020 = vmatprep.subr.bf16.mxu0 0
    %1021 = vmatpush1.bf16.msra.mxu0 0
    %1022 = vmatprep.subr.bf16.mxu0 0
    %1023 = vmatpush1.bf16.msra.mxu0 0
    %1024 = vmatprep.subr.bf16.mxu0 0
    %1025 = vmatpush1.bf16.msra.mxu0 0
    %1026 = vmatprep.subr.bf16.mxu0 0
    %1027 = vmatpush1.bf16.msra.mxu0 0
    %1028 = vmatprep.subr.bf16.mxu0 0
    %1029 = vmatpush1.bf16.msra.mxu0 0
    %1030 = vmatprep.mubr.bf16.mxu0 0
    %1031 = vmatmul.mubr.bf16.gmra.mrb[0].mxu0 %v932
    %v1032 = vpop.f32.mrb[0].mxu0
    %v1033 = vadd.f32 0.0, %v1032
    %v1034 = vpop.f32.mrb[0].mxu0
    %v1035 = vpop.f32.mrb[0].mxu0
    %v1036 = vadd.f32 0.0, %v1035
    %v1037 = vpop.f32.mrb[0].mxu0
    %1038 = vdwg.mxu0
    %v1047 = vunpack.c.l.b16 %v665
    %v1048 = vunpack.c.l.b16 %v666
    %v1049 = vunpack.c.l.b16 %v667
    %v1050 = vunpack.c.l.b16 %v668
    %v1051 = vunpack.c.l.b16 %v669
    %v1052 = vunpack.c.l.b16 %v670
    %v1053 = vunpack.c.l.b16 %v671
    %v1054 = vunpack.c.l.b16 %v672
    %v1055 = vpack.c.b16 %v1048, %v1047
    %v1056 = vpack.c.b16 %v1050, %v1049
    %v1057 = vpack.c.b16 %v1052, %v1051
    %v1058 = vpack.c.b16 %v1054, %v1053
    %v1064 = vsel %vm198, %v664, 0
    %1066 = vmatprep.subr.bf16.mxu0 0
    %1067 = vmatpush1.bf16.msra.mxu0 %v1055
    %1068 = vmatprep.subr.bf16.mxu0 0
    %1069 = vmatpush1.bf16.msra.mxu0 %v1056
    %1070 = vmatprep.subr.bf16.mxu0 0
    %1071 = vmatpush1.bf16.msra.mxu0 %v1057
    %1072 = vmatprep.subr.bf16.mxu0 0
    %1073 = vmatpush1.bf16.msra.mxu0 %v1058
    %1074 = vmatprep.subr.bf16.mxu0 0
    %1075 = vmatpush1.bf16.msra.mxu0 0
    %1076 = vmatprep.subr.bf16.mxu0 0
    %1077 = vmatpush1.bf16.msra.mxu0 0
    %1078 = vmatprep.subr.bf16.mxu0 0
    %1079 = vmatpush1.bf16.msra.mxu0 0
    %1080 = vmatprep.subr.bf16.mxu0 0
    %1081 = vmatpush1.bf16.msra.mxu0 0
    %1082 = vmatprep.subr.bf16.mxu0 0
    %1083 = vmatpush1.bf16.msra.mxu0 0
    %1084 = vmatprep.subr.bf16.mxu0 0
    %1085 = vmatpush1.bf16.msra.mxu0 0
    %1086 = vmatprep.subr.bf16.mxu0 0
    %1087 = vmatpush1.bf16.msra.mxu0 0
    %1088 = vmatprep.subr.bf16.mxu0 0
    %1089 = vmatpush1.bf16.msra.mxu0 0
    %1090 = vmatprep.subr.bf16.mxu0 0
    %1091 = vmatpush1.bf16.msra.mxu0 0
    %1092 = vmatprep.subr.bf16.mxu0 0
    %1093 = vmatpush1.bf16.msra.mxu0 0
    %1094 = vmatprep.subr.bf16.mxu0 0
    %1095 = vmatpush1.bf16.msra.mxu0 0
    %1096 = vmatprep.subr.bf16.mxu0 0
    %1097 = vmatpush1.bf16.msra.mxu0 0
    %1098 = vmatprep.mubr.bf16.mxu0 0
    %1099 = vmatmul.mubr.bf16.gmra.mrb[0].mxu0 %v1064
    %v1100 = vpop.f32.mrb[0].mxu0
    %v1101 = vadd.f32 %v1033, %v1100
    %v1102 = vpop.f32.mrb[0].mxu0
    %v1103 = vpop.f32.mrb[0].mxu0
    %v1104 = vadd.f32 %v1036, %v1103
    %v1105 = vpop.f32.mrb[0].mxu0
    %1106 = vdwg.mxu0
    %v1107 = vld [vmem:[%s11] sm:$0x1]
    %v1109 = vlaneseq
    %v1110 = vshrl.u32 %v1109, 7
    %v1111 = vsub.s32 0, %v1110
    %v1112 = vrot.slane %v1107, %v1111
    %v1114 = vadd.f32 %v1101, %v1112
    %v1115 = vadd.f32 %v1104, %v1112
    %1116 = vst [vmem:[#allocation11] sm:$0xff] %v1114
    %1117 = vst [vmem:[#allocation11 + $0x8] sm:$0xff] %v1115
    // Predicated region
    $region70: #{tpu_custom_call.1} parent=1 // pred_check
      _
    $region71: #{tpu_custom_call.1} parent=1 // pred_check_branch
      %1119 = sbr.rel (0) target = $region73
    $region72: #{tpu_custom_call.1} parent=1 // pred_region
      %s1121 = ssub.s32 256, 256
      %1122 = vsyncadd [#allocation4], %s1121
      %s1123 = sshll.u32 [#allocation11], 4
      %s1124 = int_to_ptr.vmem [resolvable:$true] %s1123
      %1129 = dma.vmem_to_hbm [thread:$0]  %s1124, 256, %s12, [#allocation4], 128, 128, 8
    $region73: #{tpu_custom_call.1} parent=1 // pred_fallthru
      _
    // Predicated region
    $region74: #{tpu_custom_call.1} parent=1 // pred_check
      _
    $region75: #{tpu_custom_call.1} parent=1 // pred_check_branch
      %1131 = sbr.rel (0) target = $region77
    $region76: #{tpu_custom_call.1} parent=1 // pred_region
      %1132 = dma.done [#allocation4], 256
    $region77: #{tpu_custom_call.1} parent=1 // pred_fallthru
      _
    %1133 = vsyncpa [#allocation3], 1
    %1134 = vsyncpa [#allocation6], 1
    %1135 = vsyncpa [#allocation9], 1
    %1136 = vsyncpa [#allocation4], 1

</llo_original>
